<compile_context>
chip_gen: v5e
topology: v5e:2x2
jax: 0.10.0
libtpu: 0.0.40
codegen_flags: <defaults>
</compile_context>

<pallas_src>
import functools
import math

import jax
import jax.numpy as jnp
from jax.experimental import pallas as pl
from jax.experimental.pallas import tpu as pltpu


# ------------------------------ tiling helpers ------------------------------

def _ceil(a, b):
    return -(-a // b)


def _tile_rows(m, pref=512):
    """Row tile: multiple of 8 dividing m; >=2 blocks when possible (megacore)."""
    if m <= 8 or m % 8 != 0:
        return m
    target = min(pref, max(8, (m // 2) // 8 * 8))
    t = target
    while t >= 8 and m % t != 0:
        t -= 8
    return t if t >= 8 else m


def _tile_lane(n, pref=512):
    """Tile for a last (lane) dim: full if small / not 128-divisible, else a
    multiple of 128 that divides n (keeps the BlockSpec lane rule satisfied)."""
    if n <= pref or n % 128 != 0:
        return n
    t = (pref // 128) * 128
    while t >= 128 and n % t != 0:
        t -= 128
    return t if t >= 128 else n


def _padded_bytes(shape, dtype):
    """VMEM footprint of one block, padded to the (8, 128) native tile."""
    s = list(shape)
    while len(s) < 2:
        s.insert(0, 1)
    s[-1] = _ceil(s[-1], 128) * 128
    s[-2] = _ceil(s[-2], 8) * 8
    n = 1
    for d in s:
        n *= d
    return n * jnp.dtype(dtype).itemsize


def _vmem_limit(block_bytes, scratch_bytes):
    """Explicit scoped-VMEM budget: double-buffered blocks + scratch + headroom."""
    est = int((2 * block_bytes + scratch_bytes) * 1.25) + (4 << 20)
    return max(16 << 20, min(est, 96 << 20))


# ----------------------------- Pallas kernels -------------------------------

def _mha_flash_kernel(qsrc_ref, ksrc_ref, vsrc_ref, res_ref,
                      wq_ref, bq_ref, wk_ref, bk_ref, wv_ref, bv_ref,
                      wo_ref, bo_ref, g_ref, bt_ref, *rest,
                      num_heads, scale, has_mask, eps):
    """Fused per-batch MHA block with flash (online-softmax) Sk tiling.

    Computes   LayerNorm(value + (softmax(mask(QK^T/sqrt(dh))) V) @ Wo + bo)
    with the Q/K/V projections done in-kernel (bf16 operands, f32 accumulation).
    Grid: (batch, Sk_chunks) with dims ("parallel", "arbitrary").
    """
    if has_mask:
        mask_ref, o_ref, q_s, m_s, l_s, acc_s, ctx_s = rest
    else:
        mask_ref = None
        o_ref, q_s, m_s, l_s, acc_s, ctx_s = rest

    kv = pl.program_id(1)
    d_model = q_s.shape[-1]
    dh = d_model // num_heads
    bf16 = jnp.bfloat16

    @pl.when(kv == 0)
    def _():
        q = jnp.dot(qsrc_ref[0].astype(bf16), wq_ref[...],
                    preferred_element_type=jnp.float32) + bq_ref[...]
        q_s[...] = (q * scale).astype(bf16)            # fold 1/sqrt(dh) into Q
        m_s[...] = jnp.full_like(m_s, -1e30)
        l_s[...] = jnp.zeros_like(l_s)
        acc_s[...] = jnp.zeros_like(acc_s)

    # K / V projections for this Sk chunk only (bf16 operands for the MXU).
    k = (jnp.dot(ksrc_ref[0].astype(bf16), wk_ref[...],
                 preferred_element_type=jnp.float32) + bk_ref[...]).astype(bf16)
    v = (jnp.dot(vsrc_ref[0].astype(bf16), wv_ref[...],
                 preferred_element_type=jnp.float32) + bv_ref[...]).astype(bf16)

    # TODO(synk): replace the static per-head unroll with a single head-batched
    #             dot_general (heads as a batch dim) to better fill the 256-wide MXU.
    for h in range(num_heads):
        sl = slice(h * dh, (h + 1) * dh)
        qh = q_s[:, sl]                                # (Sq, dh)  bf16
        kh = k[:, sl]                                  # (tkv, dh) bf16
        vh = v[:, sl]                                  # (tkv, dh) bf16
        s = jax.lax.dot_general(qh, kh, (((1,), (1,)), ((), ())),
                                preferred_element_type=jnp.float32)  # (Sq, tkv)
        if has_mask:
            s = jnp.where(mask_ref[0] != 0, s, -1e9)   # masked_fill semantics
        m_prev = m_s[h]                                # (Sq, 1)
        m_new = jnp.maximum(m_prev, jnp.max(s, axis=-1, keepdims=True))
        alpha = jnp.exp(m_prev - m_new)
        p = jnp.exp(s - m_new)
        l_s[h] = alpha * l_s[h] + jnp.sum(p, axis=-1, keepdims=True)
        acc_s[h] = alpha * acc_s[h] + jnp.dot(p.astype(bf16), vh,
                                              preferred_element_type=jnp.float32)
        m_s[h] = m_new

    @pl.when(kv == pl.num_programs(1) - 1)
    def _():
        # Normalize each head and pack eagerly into a lane-dense (Sq, D) tile.
        for h in range(num_heads):
            inv_l = pl.reciprocal(l_s[h], approx=True)
            ctx_s[:, h * dh:(h + 1) * dh] = acc_s[h] * inv_l
        proj = jnp.dot(ctx_s[...].astype(bf16), wo_ref[...],
                       preferred_element_type=jnp.float32) + bo_ref[...]
        z = proj + res_ref[0]                          # residual = value input (f32)
        mu = jnp.mean(z, axis=-1, keepdims=True)
        var = jnp.mean((z - mu) ** 2, axis=-1, keepdims=True)
        zn = (z - mu) * jax.lax.rsqrt(var + eps)
        o_ref[...] = ((zn * g_ref[...] + bt_ref[...])[None]).astype(o_ref.dtype)


def _ffn_block_kernel(x_ref, w1_ref, b1_ref, w2_ref, b2_ref, g_ref, bt_ref,
                      o_ref, acc_ref, *, eps):
    """o = LayerNorm(x + relu(x@W1+b1)@W2 + b2); d_ff tiled via grid axis 1."""
    f = pl.program_id(1)

    @pl.when(f == 0)
    def _():
        acc_ref[...] = jnp.zeros_like(acc_ref)

    xb = x_ref[...].astype(jnp.bfloat16)
    h = jnp.dot(xb, w1_ref[...], preferred_element_type=jnp.float32) + b1_ref[...]
    h = jnp.maximum(h, 0.0).astype(jnp.bfloat16)
    acc_ref[...] += jnp.dot(h, w2_ref[...], preferred_element_type=jnp.float32)

    @pl.when(f == pl.num_programs(1) - 1)
    def _():
        z = acc_ref[...] + b2_ref[...] + x_ref[...]
        mu = jnp.mean(z, axis=-1, keepdims=True)
        var = jnp.mean((z - mu) ** 2, axis=-1, keepdims=True)
        zn = (z - mu) * jax.lax.rsqrt(var + eps)
        o_ref[...] = (zn * g_ref[...] + bt_ref[...]).astype(o_ref.dtype)


# ------------------------------- wrappers ------------------------------------

def mha_block(p, query, key, value, mask, gamma, beta, num_heads, eps=1e-5):
    """LayerNorm(value + MultiHeadAttention(query, key, value, mask))."""
    B, Sq, D = query.shape
    Sk = key.shape[1]
    Sv = value.shape[1]
    assert Sk == Sv, "key and value must share the same sequence length"
    assert Sq == Sv, "residual add requires query/value sequence lengths to match"
    assert D % num_heads == 0
    dh = D // num_heads
    scale = 1.0 / math.sqrt(dh)
    has_mask = mask is not None
    bf16 = jnp.bfloat16

    tkv = _tile_lane(Sk)          # flash axis chunk: multiple of 128 (or full Sk)
    nkv = Sk // tkv

    wq, wk = p["wq"].astype(bf16), p["wk"].astype(bf16)
    wv, wo = p["wv"].astype(bf16), p["wo"].astype(bf16)

    args = [query, key, value, value,
            wq, p["bq"].reshape(1, D), wk, p["bk"].reshape(1, D),
            wv, p["bv"].reshape(1, D), wo, p["bo"].reshape(1, D),
            gamma.reshape(1, D), beta.reshape(1, D)]
    # TODO(synk): add a parallel Sq row-tile grid axis (grid=(B, Sq//tq, nkv)) so
    #             v7x's two TensorCores stay busy when B is 1 / odd.
    # TODO(synk): mark constant-index weight specs pipeline_mode=pl.Buffered(1) to
    #             drop their second pipeline buffer once that path is validated.
    in_specs = [
        pl.BlockSpec((1, Sq, D), lambda b, kv: (b, 0, 0)),     # query source
        pl.BlockSpec((1, tkv, D), lambda b, kv: (b, kv, 0)),   # key source chunk
        pl.BlockSpec((1, tkv, D), lambda b, kv: (b, kv, 0)),   # value source chunk
        pl.BlockSpec((1, Sq, D), lambda b, kv: (b, 0, 0)),     # residual (= value)
        pl.BlockSpec((D, D), lambda b, kv: (0, 0)),            # Wq
        pl.BlockSpec((1, D), lambda b, kv: (0, 0)),            # bq
        pl.BlockSpec((D, D), lambda b, kv: (0, 0)),            # Wk
        pl.BlockSpec((1, D), lambda b, kv: (0, 0)),            # bk
        pl.BlockSpec((D, D), lambda b, kv: (0, 0)),            # Wv
        pl.BlockSpec((1, D), lambda b, kv: (0, 0)),            # bv
        pl.BlockSpec((D, D), lambda b, kv: (0, 0)),            # Wo
        pl.BlockSpec((1, D), lambda b, kv: (0, 0)),            # bo
        pl.BlockSpec((1, D), lambda b, kv: (0, 0)),            # LN gamma
        pl.BlockSpec((1, D), lambda b, kv: (0, 0)),            # LN beta
    ]
    if has_mask:
        m = mask if mask.ndim == 3 else mask[None]
        m = m.astype(bf16)        # 0/1 keep-mask; expanded to -1e9 fill in-kernel
        if m.shape[0] == B:
            in_specs.append(pl.BlockSpec((1, Sq, tkv), lambda b, kv: (b, 0, kv)))
        else:
            in_specs.append(pl.BlockSpec((1, Sq, tkv), lambda b, kv: (0, 0, kv)))
        args.append(m)

    scratch_shapes = [
        pltpu.VMEM((Sq, D), bf16),                       # scaled Q projection
        pltpu.VMEM((num_heads, Sq, 1), jnp.float32),     # running max  m
        pltpu.VMEM((num_heads, Sq, 1), jnp.float32),     # running sum  l
        pltpu.VMEM((num_heads, Sq, dh), jnp.float32),    # running context acc
        pltpu.VMEM((Sq, D), jnp.float32),                # packed lane-dense context
    ]

    block_bytes = (3 * _padded_bytes((1, Sq, D), jnp.float32)      # q / res / out
                   + 2 * _padded_bytes((1, tkv, D), jnp.float32)   # k / v chunks
                   + 4 * _padded_bytes((D, D), bf16)               # Wq..Wo
                   + 6 * _padded_bytes((1, D), jnp.float32))       # biases + LN
    if has_mask:
        block_bytes += _padded_bytes((1, Sq, tkv), bf16)
    scratch_bytes = (_padded_bytes((Sq, D), bf16)
                     + 2 * _padded_bytes((num_heads, Sq, 1), jnp.float32)
                     + _padded_bytes((num_heads, Sq, dh), jnp.float32)
                     + _padded_bytes((Sq, D), jnp.float32))

    kern = functools.partial(_mha_flash_kernel, num_heads=num_heads, scale=scale,
                             has_mask=has_mask, eps=eps)
    return pl.pallas_call(
        kern,
        out_shape=jax.ShapeDtypeStruct((B, Sq, D), value.dtype),
        grid=(B, nkv),
        in_specs=in_specs,
        out_specs=pl.BlockSpec((1, Sq, D), lambda b, kv: (b, 0, 0)),
        scratch_shapes=scratch_shapes,
        compiler_params=pltpu.CompilerParams(
            dimension_semantics=("parallel", "arbitrary"),
            vmem_limit_bytes=_vmem_limit(block_bytes, scratch_bytes)),
    )(*args)


def ffn_block(x2d, ffn_p, gamma, beta, eps=1e-5):
    """LayerNorm(x + FFN(x)); rows tiled "parallel", d_ff tiled "arbitrary"."""
    M, D = x2d.shape
    F = ffn_p["w1"].shape[1]
    bf16 = jnp.bfloat16
    tm = _tile_rows(M, pref=512)
    tf = _tile_lane(F, pref=512)
    nm, nf = M // tm, F // tf

    w1, w2 = ffn_p["w1"].astype(bf16), ffn_p["w2"].astype(bf16)

    block_bytes = (2 * _padded_bytes((tm, D), jnp.float32)          # x, out
                   + _padded_bytes((D, tf), bf16)
                   + _padded_bytes((tf, D), bf16)
                   + _padded_bytes((1, tf), jnp.float32)
                   + 3 * _padded_bytes((1, D), jnp.float32))
    scratch_bytes = _padded_bytes((tm, D), jnp.float32)

    return pl.pallas_call(
        functools.partial(_ffn_block_kernel, eps=eps),
        out_shape=jax.ShapeDtypeStruct((M, D), x2d.dtype),
        grid=(nm, nf),
        in_specs=[
            pl.BlockSpec((tm, D), lambda i, f: (i, 0)),
            pl.BlockSpec((D, tf), lambda i, f: (0, f)),
            pl.BlockSpec((1, tf), lambda i, f: (0, f)),
            pl.BlockSpec((tf, D), lambda i, f: (f, 0)),
            pl.BlockSpec((1, D), lambda i, f: (0, 0)),
            pl.BlockSpec((1, D), lambda i, f: (0, 0)),
            pl.BlockSpec((1, D), lambda i, f: (0, 0)),
        ],
        out_specs=pl.BlockSpec((tm, D), lambda i, f: (i, 0)),
        scratch_shapes=[pltpu.VMEM((tm, D), jnp.float32)],
        compiler_params=pltpu.CompilerParams(
            dimension_semantics=("parallel", "arbitrary"),
            vmem_limit_bytes=_vmem_limit(block_bytes, scratch_bytes)),
    )(x2d, w1, ffn_p["b1"].reshape(1, F), w2, ffn_p["b2"].reshape(1, D),
      gamma.reshape(1, D), beta.reshape(1, D))


# -------------------------- composed decoder layer ---------------------------

def decoder_layer(params, x, encoder_output, src_mask=None, tgt_mask=None, num_heads=4):
    B, S, D = x.shape
    # 1) masked self-attention fused with Wo projection + residual + LayerNorm1
    x = mha_block(params["mha1"], x, x, x, tgt_mask,
                  params["ln1_g"], params["ln1_b"], num_heads)
    # 2) cross attention — argument order exactly as in the PyTorch forward:
    #    (query=encoder_output, key=encoder_output, value=x, mask=src_mask);
    #    residual is x (= the value input), fused with Wo + LayerNorm2.
    x = mha_block(params["mha2"], encoder_output, encoder_output, x, src_mask,
                  params["ln2_g"], params["ln2_b"], num_heads)
    # 3) position-wise feed forward fused with residual + LayerNorm3 (d_ff tiled)
    x = ffn_block(x.reshape(B * S, D), params["ffn"],
                  params["ln3_g"], params["ln3_b"]).reshape(B, S, D)
    return x


# ------------------------------ param setup ----------------------------------

def init_params(key, d_model, d_ff, num_heads):
    keys = iter(jax.random.split(key, 16))

    def dense(k, din, dout):
        w = 0.02 * jax.random.normal(k, (din, dout), dtype=jnp.float32)
        b = jnp.zeros((dout,), dtype=jnp.float32)
        return w, b

    def mha(k):
        ks = jax.random.split(k, 4)
        wq, bq = dense(ks[0], d_model, d_model)
        wk, bk = dense(ks[1], d_model, d_model)
        wv, bv = dense(ks[2], d_model, d_model)
        wo, bo = dense(ks[3], d_model, d_model)
        return dict(wq=wq, bq=bq, wk=wk, bk=bk, wv=wv, bv=bv, wo=wo, bo=bo)

    w1, b1 = dense(next(keys), d_model, d_ff)
    w2, b2 = dense(next(keys), d_ff, d_model)
    return dict(
        mha1=mha(next(keys)),
        mha2=mha(next(keys)),
        ffn=dict(w1=w1, b1=b1, w2=w2, b2=b2),
        ln1_g=jnp.ones((d_model,), jnp.float32), ln1_b=jnp.zeros((d_model,), jnp.float32),
        ln2_g=jnp.ones((d_model,), jnp.float32), ln2_b=jnp.zeros((d_model,), jnp.float32),
        ln3_g=jnp.ones((d_model,), jnp.float32), ln3_b=jnp.zeros((d_model,), jnp.float32),
    )


# --------------------------- pure-JAX reference -------------------------------

def _ref_mha(p, query, key, value, mask, num_heads):
    B, Sq, D = query.shape
    dh = D // num_heads
    q = query @ p["wq"] + p["bq"]
    k = key @ p["wk"] + p["bk"]
    v = value @ p["wv"] + p["bv"]

    def split(t):
        b, s, _ = t.shape
        return t.reshape(b, s, num_heads, dh).transpose(0, 2, 1, 3)

    qh, kh, vh = split(q), split(k), split(v)
    s = jnp.einsum("bhqd,bhkd->bhqk", qh, kh) / math.sqrt(dh)
    if mask is not None:
        m = mask if mask.ndim == 3 else mask[None]
        s = jnp.where(m[:, None] != 0, s, -1e9)
    a = jax.nn.softmax(s, axis=-1)
    o = jnp.einsum("bhqk,bhkd->bhqd", a, vh)
    o = o.transpose(0, 2, 1, 3).reshape(B, Sq, D)
    return o @ p["wo"] + p["bo"]


def _ref_ln(x, g, b, eps=1e-5):
    mu = x.mean(-1, keepdims=True)
    var = ((x - mu) ** 2).mean(-1, keepdims=True)
    return (x - mu) / jnp.sqrt(var + eps) * g + b


def _ref_decoder(params, x, enc, src_mask, tgt_mask, num_heads):
    a1 = _ref_mha(params["mha1"], x, x, x, tgt_mask, num_heads)
    x = _ref_ln(x + a1, params["ln1_g"], params["ln1_b"])
    a2 = _ref_mha(params["mha2"], enc, enc, x, src_mask, num_heads)
    x = _ref_ln(x + a2, params["ln2_g"], params["ln2_b"])
    ff = jnp.maximum(x @ params["ffn"]["w1"] + params["ffn"]["b1"], 0.0)
    ff = ff @ params["ffn"]["w2"] + params["ffn"]["b2"]
    x = _ref_ln(x + ff, params["ln3_g"], params["ln3_b"])
    return x


if __name__ == "__main__":
    B, S, d_model, d_ff, num_heads = 2, 8, 32, 64, 4

    key = jax.random.PRNGKey(0)
    k_p, k_x, k_enc = jax.random.split(key, 3)
    params = init_params(k_p, d_model, d_ff, num_heads)

    x = jax.random.normal(k_x, (B, S, d_model), dtype=jnp.float32)
    encoder_output = jax.random.normal(k_enc, (B, S, d_model), dtype=jnp.float32)

    # causal target mask (1 = keep, 0 = masked), broadcast over batch & heads
    tgt_mask = jnp.tril(jnp.ones((S, S), dtype=jnp.float32))[None, :, :]
    src_mask = None

    out = decoder_layer(params, x, encoder_output, src_mask=src_mask,
                        tgt_mask=tgt_mask, num_heads=num_heads)
    out = jax.block_until_ready(out)
    assert out.shape == (B, S, d_model)

    ref = _ref_decoder(params, x, encoder_output, src_mask, tgt_mask, num_heads)
    err = float(jnp.max(jnp.abs(out - ref)))
    assert err < 2e-2, f"max abs error vs reference: {err}"
    print("KERNEL_OK")
</pallas_src>

<mosaic_0001>
module attributes {stable_mosaic.version = 11 : i64} {
  func.func @_mha_flash_kernel(%arg0: i32, %arg1: i32, %arg2: memref<1x8x32xf32, #tpu.memory_space<vmem>>, %arg3: memref<1x8x32xf32, #tpu.memory_space<vmem>>, %arg4: memref<1x8x32xf32, #tpu.memory_space<vmem>>, %arg5: memref<1x8x32xf32, #tpu.memory_space<vmem>>, %arg6: memref<32x32xbf16, #tpu.memory_space<vmem>>, %arg7: memref<1x32xf32, #tpu.memory_space<vmem>>, %arg8: memref<32x32xbf16, #tpu.memory_space<vmem>>, %arg9: memref<1x32xf32, #tpu.memory_space<vmem>>, %arg10: memref<32x32xbf16, #tpu.memory_space<vmem>>, %arg11: memref<1x32xf32, #tpu.memory_space<vmem>>, %arg12: memref<32x32xbf16, #tpu.memory_space<vmem>>, %arg13: memref<1x32xf32, #tpu.memory_space<vmem>>, %arg14: memref<1x32xf32, #tpu.memory_space<vmem>>, %arg15: memref<1x32xf32, #tpu.memory_space<vmem>>, %arg16: memref<1x8x8xbf16, #tpu.memory_space<vmem>>, %arg17: memref<1x8x32xf32, #tpu.memory_space<vmem>>, %arg18: memref<8x32xbf16, #tpu.memory_space<vmem>>, %arg19: memref<4x8x1xf32, #tpu.memory_space<vmem>>, %arg20: memref<4x8x1xf32, #tpu.memory_space<vmem>>, %arg21: memref<4x8x8xf32, #tpu.memory_space<vmem>>, %arg22: memref<8x32xf32, #tpu.memory_space<vmem>>) attributes {dimension_semantics = [#tpu.dimension_semantics<parallel>, #tpu.dimension_semantics<arbitrary>], iteration_bounds = array<i64: 2, 1>, scalar_prefetch = 0 : i64, scratch_operands = 5 : i64, tpu.core_type = #tpu.core_type<tc>, window_params = [{transform_indices = @transform_0, window_bounds = array<i64: 1, 8, 32>}, {transform_indices = @transform_1, window_bounds = array<i64: 1, 8, 32>}, {transform_indices = @transform_2, window_bounds = array<i64: 1, 8, 32>}, {transform_indices = @transform_3, window_bounds = array<i64: 1, 8, 32>}, {pipeline_mode = #tpu.pipeline_mode<synchronous>, transform_indices = @transform_4, window_bounds = array<i64: 32, 32>}, {pipeline_mode = #tpu.pipeline_mode<synchronous>, transform_indices = @transform_5, window_bounds = array<i64: 1, 32>}, {pipeline_mode = #tpu.pipeline_mode<synchronous>, transform_indices = @transform_6, window_bounds = array<i64: 32, 32>}, {pipeline_mode = #tpu.pipeline_mode<synchronous>, transform_indices = @transform_7, window_bounds = array<i64: 1, 32>}, {pipeline_mode = #tpu.pipeline_mode<synchronous>, transform_indices = @transform_8, window_bounds = array<i64: 32, 32>}, {pipeline_mode = #tpu.pipeline_mode<synchronous>, transform_indices = @transform_9, window_bounds = array<i64: 1, 32>}, {pipeline_mode = #tpu.pipeline_mode<synchronous>, transform_indices = @transform_10, window_bounds = array<i64: 32, 32>}, {pipeline_mode = #tpu.pipeline_mode<synchronous>, transform_indices = @transform_11, window_bounds = array<i64: 1, 32>}, {pipeline_mode = #tpu.pipeline_mode<synchronous>, transform_indices = @transform_12, window_bounds = array<i64: 1, 32>}, {pipeline_mode = #tpu.pipeline_mode<synchronous>, transform_indices = @transform_13, window_bounds = array<i64: 1, 32>}, {transform_indices = @transform_14, window_bounds = array<i64: 1, 8, 8>}, {transform_indices = @transform_15, window_bounds = array<i64: 1, 8, 32>}]} {
    %c0_i32 = arith.constant 0 : i32
    %0 = arith.cmpi eq, %arg1, %c0_i32 : i32
    %1 = arith.extui %0 : i1 to i32
    %c0_i32_0 = arith.constant 0 : i32
    %2 = arith.cmpi ne, %1, %c0_i32_0 : i32
    scf.if %2 {
      %c0_127 = arith.constant 0 : index
      %c0_128 = arith.constant 0 : index
      %c0_129 = arith.constant 0 : index
      %192 = vector.load %arg2[%c0_127, %c0_128, %c0_129] : memref<1x8x32xf32, #tpu.memory_space<vmem>>, vector<1x8x32xf32>
      %193 = vector.shape_cast %192 : vector<1x8x32xf32> to vector<8x32xf32>
      %194 = arith.truncf %193 : vector<8x32xf32> to vector<8x32xbf16>
      %c0_130 = arith.constant 0 : index
      %c0_131 = arith.constant 0 : index
      %195 = vector.load %arg6[%c0_130, %c0_131] : memref<32x32xbf16, #tpu.memory_space<vmem>>, vector<32x32xbf16>
      %cst_132 = arith.constant dense<0.000000e+00> : vector<8x32xf32>
      %196 = tpu.matmul %194, %195, %cst_132 {dimension_numbers = #tpu.dot_dimension_numbers<[1], [0], [0], [1], [0, 0, 1, 1], [], []>} : vector<8x32xbf16>, vector<32x32xbf16>, vector<8x32xf32> -> vector<8x32xf32>
      %c0_133 = arith.constant 0 : index
      %c0_134 = arith.constant 0 : index
      %197 = vector.load %arg7[%c0_133, %c0_134] : memref<1x32xf32, #tpu.memory_space<vmem>>, vector<1x32xf32>
      %198 = vector.broadcast %197 : vector<1x32xf32> to vector<8x32xf32>
      %199 = arith.addf %196, %198 : vector<8x32xf32>
      %cst_135 = arith.constant 0.353553385 : f32
      %200 = vector.broadcast %cst_135 : f32 to vector<8x32xf32>
      %201 = arith.mulf %199, %200 : vector<8x32xf32>
      %202 = arith.truncf %201 : vector<8x32xf32> to vector<8x32xbf16>
      %c0_136 = arith.constant 0 : index
      %c0_137 = arith.constant 0 : index
      %203 = vector.load %arg18[%c0_136, %c0_137] : memref<8x32xbf16, #tpu.memory_space<vmem>>, vector<8x32xbf16>
      tpu.vector_store %arg18[%c0_136, %c0_137], %202 {strides = array<i32>} : memref<8x32xbf16, #tpu.memory_space<vmem>>, vector<8x32xbf16>,
      %cst_138 = arith.constant -1.000000e+30 : f32
      %204 = vector.broadcast %cst_138 : f32 to vector<4x8x1xf32>
      %c0_139 = arith.constant 0 : index
      %c0_140 = arith.constant 0 : index
      %c0_141 = arith.constant 0 : index
      %205 = vector.load %arg19[%c0_139, %c0_140, %c0_141] : memref<4x8x1xf32, #tpu.memory_space<vmem>>, vector<4x8x1xf32>
      tpu.vector_store %arg19[%c0_139, %c0_140, %c0_141], %204 {strides = array<i32>} : memref<4x8x1xf32, #tpu.memory_space<vmem>>, vector<4x8x1xf32>,
      %cst_142 = arith.constant 0.000000e+00 : f32
      %206 = vector.broadcast %cst_142 : f32 to vector<4x8x1xf32>
      %c0_143 = arith.constant 0 : index
      %c0_144 = arith.constant 0 : index
      %c0_145 = arith.constant 0 : index
      %207 = vector.load %arg20[%c0_143, %c0_144, %c0_145] : memref<4x8x1xf32, #tpu.memory_space<vmem>>, vector<4x8x1xf32>
      tpu.vector_store %arg20[%c0_143, %c0_144, %c0_145], %206 {strides = array<i32>} : memref<4x8x1xf32, #tpu.memory_space<vmem>>, vector<4x8x1xf32>,
      %cst_146 = arith.constant 0.000000e+00 : f32
      %208 = vector.broadcast %cst_146 : f32 to vector<4x8x8xf32>
      %c0_147 = arith.constant 0 : index
      %c0_148 = arith.constant 0 : index
      %c0_149 = arith.constant 0 : index
      %209 = vector.load %arg21[%c0_147, %c0_148, %c0_149] : memref<4x8x8xf32, #tpu.memory_space<vmem>>, vector<4x8x8xf32>
      tpu.vector_store %arg21[%c0_147, %c0_148, %c0_149], %208 {strides = array<i32>} : memref<4x8x8xf32, #tpu.memory_space<vmem>>, vector<4x8x8xf32>,
    } else {
    }
    %c0 = arith.constant 0 : index
    %c0_1 = arith.constant 0 : index
    %c0_2 = arith.constant 0 : index
    %3 = vector.load %arg3[%c0, %c0_1, %c0_2] : memref<1x8x32xf32, #tpu.memory_space<vmem>>, vector<1x8x32xf32>
    %4 = vector.shape_cast %3 : vector<1x8x32xf32> to vector<8x32xf32>
    %5 = arith.truncf %4 : vector<8x32xf32> to vector<8x32xbf16>
    %c0_3 = arith.constant 0 : index
    %c0_4 = arith.constant 0 : index
    %6 = vector.load %arg8[%c0_3, %c0_4] : memref<32x32xbf16, #tpu.memory_space<vmem>>, vector<32x32xbf16>
    %cst = arith.constant dense<0.000000e+00> : vector<8x32xf32>
    %7 = tpu.matmul %5, %6, %cst {dimension_numbers = #tpu.dot_dimension_numbers<[1], [0], [0], [1], [0, 0, 1, 1], [], []>} : vector<8x32xbf16>, vector<32x32xbf16>, vector<8x32xf32> -> vector<8x32xf32>
    %c0_5 = arith.constant 0 : index
    %c0_6 = arith.constant 0 : index
    %8 = vector.load %arg9[%c0_5, %c0_6] : memref<1x32xf32, #tpu.memory_space<vmem>>, vector<1x32xf32>
    %9 = vector.broadcast %8 : vector<1x32xf32> to vector<8x32xf32>
    %10 = arith.addf %7, %9 : vector<8x32xf32>
    %11 = arith.truncf %10 : vector<8x32xf32> to vector<8x32xbf16>
    %c0_7 = arith.constant 0 : index
    %c0_8 = arith.constant 0 : index
    %c0_9 = arith.constant 0 : index
    %12 = vector.load %arg4[%c0_7, %c0_8, %c0_9] : memref<1x8x32xf32, #tpu.memory_space<vmem>>, vector<1x8x32xf32>
    %13 = vector.shape_cast %12 : vector<1x8x32xf32> to vector<8x32xf32>
    %14 = arith.truncf %13 : vector<8x32xf32> to vector<8x32xbf16>
    %c0_10 = arith.constant 0 : index
    %c0_11 = arith.constant 0 : index
    %15 = vector.load %arg10[%c0_10, %c0_11] : memref<32x32xbf16, #tpu.memory_space<vmem>>, vector<32x32xbf16>
    %cst_12 = arith.constant dense<0.000000e+00> : vector<8x32xf32>
    %16 = tpu.matmul %14, %15, %cst_12 {dimension_numbers = #tpu.dot_dimension_numbers<[1], [0], [0], [1], [0, 0, 1, 1], [], []>} : vector<8x32xbf16>, vector<32x32xbf16>, vector<8x32xf32> -> vector<8x32xf32>
    %c0_13 = arith.constant 0 : index
    %c0_14 = arith.constant 0 : index
    %17 = vector.load %arg11[%c0_13, %c0_14] : memref<1x32xf32, #tpu.memory_space<vmem>>, vector<1x32xf32>
    %18 = vector.broadcast %17 : vector<1x32xf32> to vector<8x32xf32>
    %19 = arith.addf %16, %18 : vector<8x32xf32>
    %20 = arith.truncf %19 : vector<8x32xf32> to vector<8x32xbf16>
    %c0_15 = arith.constant 0 : index
    %c0_16 = arith.constant 0 : index
    %21 = vector.load %arg18[%c0_15, %c0_16] : memref<8x32xbf16, #tpu.memory_space<vmem>>, vector<8x8xbf16>
    %22 = vector.extract_strided_slice %11 {offsets = [0, 0], sizes = [8, 8], strides = [1, 1]} : vector<8x32xbf16> to vector<8x8xbf16>
    %23 = vector.extract_strided_slice %20 {offsets = [0, 0], sizes = [8, 8], strides = [1, 1]} : vector<8x32xbf16> to vector<8x8xbf16>
    %cst_17 = arith.constant dense<0.000000e+00> : vector<8x8xf32>
    %24 = tpu.matmul %21, %22, %cst_17 {dimension_numbers = #tpu.dot_dimension_numbers<[1], [1], [0], [0], [0, 0, 1, 0], [], []>} : vector<8x8xbf16>, vector<8x8xbf16>, vector<8x8xf32> -> vector<8x8xf32>
    %c0_18 = arith.constant 0 : index
    %c0_19 = arith.constant 0 : index
    %c0_20 = arith.constant 0 : index
    %25 = vector.load %arg16[%c0_18, %c0_19, %c0_20] : memref<1x8x8xbf16, #tpu.memory_space<vmem>>, vector<1x8x8xbf16>
    %26 = vector.shape_cast %25 : vector<1x8x8xbf16> to vector<8x8xbf16>
    %cst_21 = arith.constant 0.000000e+00 : bf16
    %27 = vector.broadcast %cst_21 : bf16 to vector<8x8xbf16>
    %28 = arith.cmpf one, %26, %27 : vector<8x8xbf16>
    %cst_22 = arith.constant -1.000000e+09 : f32
    %29 = vector.broadcast %cst_22 : f32 to vector<8x8xf32>
    %30 = arith.select %28, %24, %29 : vector<8x8xi1>, vector<8x8xf32>
    %c0_23 = arith.constant 0 : index
    %c0_24 = arith.constant 0 : index
    %c0_25 = arith.constant 0 : index
    %31 = vector.load %arg19[%c0_23, %c0_24, %c0_25] : memref<4x8x1xf32, #tpu.memory_space<vmem>>, vector<1x8x1xf32>
    %32 = vector.shape_cast %31 : vector<1x8x1xf32> to vector<8x1xf32>
    %cst_26 = arith.constant dense<0xFF800000> : vector<8xf32>
    %33 = vector.multi_reduction <maximumf>, %30, %cst_26 [1] : vector<8x8xf32> to vector<8xf32>
    %34 = vector.shape_cast %33 : vector<8xf32> to vector<8x1xf32>
    %35 = arith.maximumf %32, %34 : vector<8x1xf32>
    %36 = arith.subf %32, %35 : vector<8x1xf32>
    %37 = math.exp %36 : vector<8x1xf32>
    %38 = vector.broadcast %35 : vector<8x1xf32> to vector<8x8xf32>
    %39 = arith.subf %30, %38 : vector<8x8xf32>
    %40 = math.exp %39 : vector<8x8xf32>
    %c0_27 = arith.constant 0 : index
    %c0_28 = arith.constant 0 : index
    %c0_29 = arith.constant 0 : index
    %41 = vector.load %arg20[%c0_27, %c0_28, %c0_29] : memref<4x8x1xf32, #tpu.memory_space<vmem>>, vector<1x8x1xf32>
    %42 = vector.shape_cast %41 : vector<1x8x1xf32> to vector<8x1xf32>
    %43 = arith.mulf %37, %42 : vector<8x1xf32>
    %cst_30 = arith.constant dense<0.000000e+00> : vector<8xf32>
    %44 = vector.multi_reduction <add>, %40, %cst_30 [1] : vector<8x8xf32> to vector<8xf32>
    %45 = vector.shape_cast %44 : vector<8xf32> to vector<8x1xf32>
    %46 = arith.addf %43, %45 : vector<8x1xf32>
    %c0_31 = arith.constant 0 : index
    %c0_32 = arith.constant 0 : index
    %c0_33 = arith.constant 0 : index
    %47 = vector.load %arg20[%c0_31, %c0_32, %c0_33] : memref<4x8x1xf32, #tpu.memory_space<vmem>>, vector<1x8x1xf32>
    %48 = vector.shape_cast %47 : vector<1x8x1xf32> to vector<8x1xf32>
    %49 = vector.shape_cast %46 : vector<8x1xf32> to vector<1x8x1xf32>
    tpu.vector_store %arg20[%c0_31, %c0_32, %c0_33], %49 {strides = array<i32>} : memref<4x8x1xf32, #tpu.memory_space<vmem>>, vector<1x8x1xf32>,
    %c0_34 = arith.constant 0 : index
    %c0_35 = arith.constant 0 : index
    %c0_36 = arith.constant 0 : index
    %50 = vector.load %arg21[%c0_34, %c0_35, %c0_36] : memref<4x8x8xf32, #tpu.memory_space<vmem>>, vector<1x8x8xf32>
    %51 = vector.shape_cast %50 : vector<1x8x8xf32> to vector<8x8xf32>
    %52 = vector.broadcast %37 : vector<8x1xf32> to vector<8x8xf32>
    %53 = arith.mulf %52, %51 : vector<8x8xf32>
    %54 = arith.truncf %40 : vector<8x8xf32> to vector<8x8xbf16>
    %cst_37 = arith.constant dense<0.000000e+00> : vector<8x8xf32>
    %55 = tpu.matmul %54, %23, %cst_37 {dimension_numbers = #tpu.dot_dimension_numbers<[1], [0], [0], [1], [0, 0, 1, 1], [], []>} : vector<8x8xbf16>, vector<8x8xbf16>, vector<8x8xf32> -> vector<8x8xf32>
    %56 = arith.addf %53, %55 : vector<8x8xf32>
    %c0_38 = arith.constant 0 : index
    %c0_39 = arith.constant 0 : index
    %c0_40 = arith.constant 0 : index
    %57 = vector.load %arg21[%c0_38, %c0_39, %c0_40] : memref<4x8x8xf32, #tpu.memory_space<vmem>>, vector<1x8x8xf32>
    %58 = vector.shape_cast %57 : vector<1x8x8xf32> to vector<8x8xf32>
    %59 = vector.shape_cast %56 : vector<8x8xf32> to vector<1x8x8xf32>
    tpu.vector_store %arg21[%c0_38, %c0_39, %c0_40], %59 {strides = array<i32>} : memref<4x8x8xf32, #tpu.memory_space<vmem>>, vector<1x8x8xf32>,
    %c0_41 = arith.constant 0 : index
    %c0_42 = arith.constant 0 : index
    %c0_43 = arith.constant 0 : index
    %60 = vector.load %arg19[%c0_41, %c0_42, %c0_43] : memref<4x8x1xf32, #tpu.memory_space<vmem>>, vector<1x8x1xf32>
    %61 = vector.shape_cast %60 : vector<1x8x1xf32> to vector<8x1xf32>
    %62 = vector.shape_cast %35 : vector<8x1xf32> to vector<1x8x1xf32>
    tpu.vector_store %arg19[%c0_41, %c0_42, %c0_43], %62 {strides = array<i32>} : memref<4x8x1xf32, #tpu.memory_space<vmem>>, vector<1x8x1xf32>,
    %c0_44 = arith.constant 0 : index
    %c8 = arith.constant 8 : index
    %63 = vector.load %arg18[%c0_44, %c8] : memref<8x32xbf16, #tpu.memory_space<vmem>>, vector<8x8xbf16>
    %64 = vector.extract_strided_slice %11 {offsets = [0, 8], sizes = [8, 8], strides = [1, 1]} : vector<8x32xbf16> to vector<8x8xbf16>
    %65 = vector.extract_strided_slice %20 {offsets = [0, 8], sizes = [8, 8], strides = [1, 1]} : vector<8x32xbf16> to vector<8x8xbf16>
    %cst_45 = arith.constant dense<0.000000e+00> : vector<8x8xf32>
    %66 = tpu.matmul %63, %64, %cst_45 {dimension_numbers = #tpu.dot_dimension_numbers<[1], [1], [0], [0], [0, 0, 1, 0], [], []>} : vector<8x8xbf16>, vector<8x8xbf16>, vector<8x8xf32> -> vector<8x8xf32>
    %c0_46 = arith.constant 0 : index
    %c0_47 = arith.constant 0 : index
    %c0_48 = arith.constant 0 : index
    %67 = vector.load %arg16[%c0_46, %c0_47, %c0_48] : memref<1x8x8xbf16, #tpu.memory_space<vmem>>, vector<1x8x8xbf16>
    %68 = vector.shape_cast %67 : vector<1x8x8xbf16> to vector<8x8xbf16>
    %cst_49 = arith.constant 0.000000e+00 : bf16
    %69 = vector.broadcast %cst_49 : bf16 to vector<8x8xbf16>
    %70 = arith.cmpf one, %68, %69 : vector<8x8xbf16>
    %cst_50 = arith.constant -1.000000e+09 : f32
    %71 = vector.broadcast %cst_50 : f32 to vector<8x8xf32>
    %72 = arith.select %70, %66, %71 : vector<8x8xi1>, vector<8x8xf32>
    %c1 = arith.constant 1 : index
    %c0_51 = arith.constant 0 : index
    %c0_52 = arith.constant 0 : index
    %73 = vector.load %arg19[%c1, %c0_51, %c0_52] : memref<4x8x1xf32, #tpu.memory_space<vmem>>, vector<1x8x1xf32>
    %74 = vector.shape_cast %73 : vector<1x8x1xf32> to vector<8x1xf32>
    %cst_53 = arith.constant dense<0xFF800000> : vector<8xf32>
    %75 = vector.multi_reduction <maximumf>, %72, %cst_53 [1] : vector<8x8xf32> to vector<8xf32>
    %76 = vector.shape_cast %75 : vector<8xf32> to vector<8x1xf32>
    %77 = arith.maximumf %74, %76 : vector<8x1xf32>
    %78 = arith.subf %74, %77 : vector<8x1xf32>
    %79 = math.exp %78 : vector<8x1xf32>
    %80 = vector.broadcast %77 : vector<8x1xf32> to vector<8x8xf32>
    %81 = arith.subf %72, %80 : vector<8x8xf32>
    %82 = math.exp %81 : vector<8x8xf32>
    %c1_54 = arith.constant 1 : index
    %c0_55 = arith.constant 0 : index
    %c0_56 = arith.constant 0 : index
    %83 = vector.load %arg20[%c1_54, %c0_55, %c0_56] : memref<4x8x1xf32, #tpu.memory_space<vmem>>, vector<1x8x1xf32>
    %84 = vector.shape_cast %83 : vector<1x8x1xf32> to vector<8x1xf32>
    %85 = arith.mulf %79, %84 : vector<8x1xf32>
    %cst_57 = arith.constant dense<0.000000e+00> : vector<8xf32>
    %86 = vector.multi_reduction <add>, %82, %cst_57 [1] : vector<8x8xf32> to vector<8xf32>
    %87 = vector.shape_cast %86 : vector<8xf32> to vector<8x1xf32>
    %88 = arith.addf %85, %87 : vector<8x1xf32>
    %c1_58 = arith.constant 1 : index
    %c0_59 = arith.constant 0 : index
    %c0_60 = arith.constant 0 : index
    %89 = vector.load %arg20[%c1_58, %c0_59, %c0_60] : memref<4x8x1xf32, #tpu.memory_space<vmem>>, vector<1x8x1xf32>
    %90 = vector.shape_cast %89 : vector<1x8x1xf32> to vector<8x1xf32>
    %91 = vector.shape_cast %88 : vector<8x1xf32> to vector<1x8x1xf32>
    tpu.vector_store %arg20[%c1_58, %c0_59, %c0_60], %91 {strides = array<i32>} : memref<4x8x1xf32, #tpu.memory_space<vmem>>, vector<1x8x1xf32>,
    %c1_61 = arith.constant 1 : index
    %c0_62 = arith.constant 0 : index
    %c0_63 = arith.constant 0 : index
    %92 = vector.load %arg21[%c1_61, %c0_62, %c0_63] : memref<4x8x8xf32, #tpu.memory_space<vmem>>, vector<1x8x8xf32>
    %93 = vector.shape_cast %92 : vector<1x8x8xf32> to vector<8x8xf32>
    %94 = vector.broadcast %79 : vector<8x1xf32> to vector<8x8xf32>
    %95 = arith.mulf %94, %93 : vector<8x8xf32>
    %96 = arith.truncf %82 : vector<8x8xf32> to vector<8x8xbf16>
    %cst_64 = arith.constant dense<0.000000e+00> : vector<8x8xf32>
    %97 = tpu.matmul %96, %65, %cst_64 {dimension_numbers = #tpu.dot_dimension_numbers<[1], [0], [0], [1], [0, 0, 1, 1], [], []>} : vector<8x8xbf16>, vector<8x8xbf16>, vector<8x8xf32> -> vector<8x8xf32>
    %98 = arith.addf %95, %97 : vector<8x8xf32>
    %c1_65 = arith.constant 1 : index
    %c0_66 = arith.constant 0 : index
    %c0_67 = arith.constant 0 : index
    %99 = vector.load %arg21[%c1_65, %c0_66, %c0_67] : memref<4x8x8xf32, #tpu.memory_space<vmem>>, vector<1x8x8xf32>
    %100 = vector.shape_cast %99 : vector<1x8x8xf32> to vector<8x8xf32>
    %101 = vector.shape_cast %98 : vector<8x8xf32> to vector<1x8x8xf32>
    tpu.vector_store %arg21[%c1_65, %c0_66, %c0_67], %101 {strides = array<i32>} : memref<4x8x8xf32, #tpu.memory_space<vmem>>, vector<1x8x8xf32>,
    %c1_68 = arith.constant 1 : index
    %c0_69 = arith.constant 0 : index
    %c0_70 = arith.constant 0 : index
    %102 = vector.load %arg19[%c1_68, %c0_69, %c0_70] : memref<4x8x1xf32, #tpu.memory_space<vmem>>, vector<1x8x1xf32>
    %103 = vector.shape_cast %102 : vector<1x8x1xf32> to vector<8x1xf32>
    %104 = vector.shape_cast %77 : vector<8x1xf32> to vector<1x8x1xf32>
    tpu.vector_store %arg19[%c1_68, %c0_69, %c0_70], %104 {strides = array<i32>} : memref<4x8x1xf32, #tpu.memory_space<vmem>>, vector<1x8x1xf32>,
    %c0_71 = arith.constant 0 : index
    %c16 = arith.constant 16 : index
    %105 = vector.load %arg18[%c0_71, %c16] : memref<8x32xbf16, #tpu.memory_space<vmem>>, vector<8x8xbf16>
    %106 = vector.extract_strided_slice %11 {offsets = [0, 16], sizes = [8, 8], strides = [1, 1]} : vector<8x32xbf16> to vector<8x8xbf16>
    %107 = vector.extract_strided_slice %20 {offsets = [0, 16], sizes = [8, 8], strides = [1, 1]} : vector<8x32xbf16> to vector<8x8xbf16>
    %cst_72 = arith.constant dense<0.000000e+00> : vector<8x8xf32>
    %108 = tpu.matmul %105, %106, %cst_72 {dimension_numbers = #tpu.dot_dimension_numbers<[1], [1], [0], [0], [0, 0, 1, 0], [], []>} : vector<8x8xbf16>, vector<8x8xbf16>, vector<8x8xf32> -> vector<8x8xf32>
    %c0_73 = arith.constant 0 : index
    %c0_74 = arith.constant 0 : index
    %c0_75 = arith.constant 0 : index
    %109 = vector.load %arg16[%c0_73, %c0_74, %c0_75] : memref<1x8x8xbf16, #tpu.memory_space<vmem>>, vector<1x8x8xbf16>
    %110 = vector.shape_cast %109 : vector<1x8x8xbf16> to vector<8x8xbf16>
    %cst_76 = arith.constant 0.000000e+00 : bf16
    %111 = vector.broadcast %cst_76 : bf16 to vector<8x8xbf16>
    %112 = arith.cmpf one, %110, %111 : vector<8x8xbf16>
    %cst_77 = arith.constant -1.000000e+09 : f32
    %113 = vector.broadcast %cst_77 : f32 to vector<8x8xf32>
    %114 = arith.select %112, %108, %113 : vector<8x8xi1>, vector<8x8xf32>
    %c2 = arith.constant 2 : index
    %c0_78 = arith.constant 0 : index
    %c0_79 = arith.constant 0 : index
    %115 = vector.load %arg19[%c2, %c0_78, %c0_79] : memref<4x8x1xf32, #tpu.memory_space<vmem>>, vector<1x8x1xf32>
    %116 = vector.shape_cast %115 : vector<1x8x1xf32> to vector<8x1xf32>
    %cst_80 = arith.constant dense<0xFF800000> : vector<8xf32>
    %117 = vector.multi_reduction <maximumf>, %114, %cst_80 [1] : vector<8x8xf32> to vector<8xf32>
    %118 = vector.shape_cast %117 : vector<8xf32> to vector<8x1xf32>
    %119 = arith.maximumf %116, %118 : vector<8x1xf32>
    %120 = arith.subf %116, %119 : vector<8x1xf32>
    %121 = math.exp %120 : vector<8x1xf32>
    %122 = vector.broadcast %119 : vector<8x1xf32> to vector<8x8xf32>
    %123 = arith.subf %114, %122 : vector<8x8xf32>
    %124 = math.exp %123 : vector<8x8xf32>
    %c2_81 = arith.constant 2 : index
    %c0_82 = arith.constant 0 : index
    %c0_83 = arith.constant 0 : index
    %125 = vector.load %arg20[%c2_81, %c0_82, %c0_83] : memref<4x8x1xf32, #tpu.memory_space<vmem>>, vector<1x8x1xf32>
    %126 = vector.shape_cast %125 : vector<1x8x1xf32> to vector<8x1xf32>
    %127 = arith.mulf %121, %126 : vector<8x1xf32>
    %cst_84 = arith.constant dense<0.000000e+00> : vector<8xf32>
    %128 = vector.multi_reduction <add>, %124, %cst_84 [1] : vector<8x8xf32> to vector<8xf32>
    %129 = vector.shape_cast %128 : vector<8xf32> to vector<8x1xf32>
    %130 = arith.addf %127, %129 : vector<8x1xf32>
    %c2_85 = arith.constant 2 : index
    %c0_86 = arith.constant 0 : index
    %c0_87 = arith.constant 0 : index
    %131 = vector.load %arg20[%c2_85, %c0_86, %c0_87] : memref<4x8x1xf32, #tpu.memory_space<vmem>>, vector<1x8x1xf32>
    %132 = vector.shape_cast %131 : vector<1x8x1xf32> to vector<8x1xf32>
    %133 = vector.shape_cast %130 : vector<8x1xf32> to vector<1x8x1xf32>
    tpu.vector_store %arg20[%c2_85, %c0_86, %c0_87], %133 {strides = array<i32>} : memref<4x8x1xf32, #tpu.memory_space<vmem>>, vector<1x8x1xf32>,
    %c2_88 = arith.constant 2 : index
    %c0_89 = arith.constant 0 : index
    %c0_90 = arith.constant 0 : index
    %134 = vector.load %arg21[%c2_88, %c0_89, %c0_90] : memref<4x8x8xf32, #tpu.memory_space<vmem>>, vector<1x8x8xf32>
    %135 = vector.shape_cast %134 : vector<1x8x8xf32> to vector<8x8xf32>
    %136 = vector.broadcast %121 : vector<8x1xf32> to vector<8x8xf32>
    %137 = arith.mulf %136, %135 : vector<8x8xf32>
    %138 = arith.truncf %124 : vector<8x8xf32> to vector<8x8xbf16>
    %cst_91 = arith.constant dense<0.000000e+00> : vector<8x8xf32>
    %139 = tpu.matmul %138, %107, %cst_91 {dimension_numbers = #tpu.dot_dimension_numbers<[1], [0], [0], [1], [0, 0, 1, 1], [], []>} : vector<8x8xbf16>, vector<8x8xbf16>, vector<8x8xf32> -> vector<8x8xf32>
    %140 = arith.addf %137, %139 : vector<8x8xf32>
    %c2_92 = arith.constant 2 : index
    %c0_93 = arith.constant 0 : index
    %c0_94 = arith.constant 0 : index
    %141 = vector.load %arg21[%c2_92, %c0_93, %c0_94] : memref<4x8x8xf32, #tpu.memory_space<vmem>>, vector<1x8x8xf32>
    %142 = vector.shape_cast %141 : vector<1x8x8xf32> to vector<8x8xf32>
    %143 = vector.shape_cast %140 : vector<8x8xf32> to vector<1x8x8xf32>
    tpu.vector_store %arg21[%c2_92, %c0_93, %c0_94], %143 {strides = array<i32>} : memref<4x8x8xf32, #tpu.memory_space<vmem>>, vector<1x8x8xf32>,
    %c2_95 = arith.constant 2 : index
    %c0_96 = arith.constant 0 : index
    %c0_97 = arith.constant 0 : index
    %144 = vector.load %arg19[%c2_95, %c0_96, %c0_97] : memref<4x8x1xf32, #tpu.memory_space<vmem>>, vector<1x8x1xf32>
    %145 = vector.shape_cast %144 : vector<1x8x1xf32> to vector<8x1xf32>
    %146 = vector.shape_cast %119 : vector<8x1xf32> to vector<1x8x1xf32>
    tpu.vector_store %arg19[%c2_95, %c0_96, %c0_97], %146 {strides = array<i32>} : memref<4x8x1xf32, #tpu.memory_space<vmem>>, vector<1x8x1xf32>,
    %c0_98 = arith.constant 0 : index
    %c24 = arith.constant 24 : index
    %147 = vector.load %arg18[%c0_98, %c24] : memref<8x32xbf16, #tpu.memory_space<vmem>>, vector<8x8xbf16>
    %148 = vector.extract_strided_slice %11 {offsets = [0, 24], sizes = [8, 8], strides = [1, 1]} : vector<8x32xbf16> to vector<8x8xbf16>
    %149 = vector.extract_strided_slice %20 {offsets = [0, 24], sizes = [8, 8], strides = [1, 1]} : vector<8x32xbf16> to vector<8x8xbf16>
    %cst_99 = arith.constant dense<0.000000e+00> : vector<8x8xf32>
    %150 = tpu.matmul %147, %148, %cst_99 {dimension_numbers = #tpu.dot_dimension_numbers<[1], [1], [0], [0], [0, 0, 1, 0], [], []>} : vector<8x8xbf16>, vector<8x8xbf16>, vector<8x8xf32> -> vector<8x8xf32>
    %c0_100 = arith.constant 0 : index
    %c0_101 = arith.constant 0 : index
    %c0_102 = arith.constant 0 : index
    %151 = vector.load %arg16[%c0_100, %c0_101, %c0_102] : memref<1x8x8xbf16, #tpu.memory_space<vmem>>, vector<1x8x8xbf16>
    %152 = vector.shape_cast %151 : vector<1x8x8xbf16> to vector<8x8xbf16>
    %cst_103 = arith.constant 0.000000e+00 : bf16
    %153 = vector.broadcast %cst_103 : bf16 to vector<8x8xbf16>
    %154 = arith.cmpf one, %152, %153 : vector<8x8xbf16>
    %cst_104 = arith.constant -1.000000e+09 : f32
    %155 = vector.broadcast %cst_104 : f32 to vector<8x8xf32>
    %156 = arith.select %154, %150, %155 : vector<8x8xi1>, vector<8x8xf32>
    %c3 = arith.constant 3 : index
    %c0_105 = arith.constant 0 : index
    %c0_106 = arith.constant 0 : index
    %157 = vector.load %arg19[%c3, %c0_105, %c0_106] : memref<4x8x1xf32, #tpu.memory_space<vmem>>, vector<1x8x1xf32>
    %158 = vector.shape_cast %157 : vector<1x8x1xf32> to vector<8x1xf32>
    %cst_107 = arith.constant dense<0xFF800000> : vector<8xf32>
    %159 = vector.multi_reduction <maximumf>, %156, %cst_107 [1] : vector<8x8xf32> to vector<8xf32>
    %160 = vector.shape_cast %159 : vector<8xf32> to vector<8x1xf32>
    %161 = arith.maximumf %158, %160 : vector<8x1xf32>
    %162 = arith.subf %158, %161 : vector<8x1xf32>
    %163 = math.exp %162 : vector<8x1xf32>
    %164 = vector.broadcast %161 : vector<8x1xf32> to vector<8x8xf32>
    %165 = arith.subf %156, %164 : vector<8x8xf32>
    %166 = math.exp %165 : vector<8x8xf32>
    %c3_108 = arith.constant 3 : index
    %c0_109 = arith.constant 0 : index
    %c0_110 = arith.constant 0 : index
    %167 = vector.load %arg20[%c3_108, %c0_109, %c0_110] : memref<4x8x1xf32, #tpu.memory_space<vmem>>, vector<1x8x1xf32>
    %168 = vector.shape_cast %167 : vector<1x8x1xf32> to vector<8x1xf32>
    %169 = arith.mulf %163, %168 : vector<8x1xf32>
    %cst_111 = arith.constant dense<0.000000e+00> : vector<8xf32>
    %170 = vector.multi_reduction <add>, %166, %cst_111 [1] : vector<8x8xf32> to vector<8xf32>
    %171 = vector.shape_cast %170 : vector<8xf32> to vector<8x1xf32>
    %172 = arith.addf %169, %171 : vector<8x1xf32>
    %c3_112 = arith.constant 3 : index
    %c0_113 = arith.constant 0 : index
    %c0_114 = arith.constant 0 : index
    %173 = vector.load %arg20[%c3_112, %c0_113, %c0_114] : memref<4x8x1xf32, #tpu.memory_space<vmem>>, vector<1x8x1xf32>
    %174 = vector.shape_cast %173 : vector<1x8x1xf32> to vector<8x1xf32>
    %175 = vector.shape_cast %172 : vector<8x1xf32> to vector<1x8x1xf32>
    tpu.vector_store %arg20[%c3_112, %c0_113, %c0_114], %175 {strides = array<i32>} : memref<4x8x1xf32, #tpu.memory_space<vmem>>, vector<1x8x1xf32>,
    %c3_115 = arith.constant 3 : index
    %c0_116 = arith.constant 0 : index
    %c0_117 = arith.constant 0 : index
    %176 = vector.load %arg21[%c3_115, %c0_116, %c0_117] : memref<4x8x8xf32, #tpu.memory_space<vmem>>, vector<1x8x8xf32>
    %177 = vector.shape_cast %176 : vector<1x8x8xf32> to vector<8x8xf32>
    %178 = vector.broadcast %163 : vector<8x1xf32> to vector<8x8xf32>
    %179 = arith.mulf %178, %177 : vector<8x8xf32>
    %180 = arith.truncf %166 : vector<8x8xf32> to vector<8x8xbf16>
    %cst_118 = arith.constant dense<0.000000e+00> : vector<8x8xf32>
    %181 = tpu.matmul %180, %149, %cst_118 {dimension_numbers = #tpu.dot_dimension_numbers<[1], [0], [0], [1], [0, 0, 1, 1], [], []>} : vector<8x8xbf16>, vector<8x8xbf16>, vector<8x8xf32> -> vector<8x8xf32>
    %182 = arith.addf %179, %181 : vector<8x8xf32>
    %c3_119 = arith.constant 3 : index
    %c0_120 = arith.constant 0 : index
    %c0_121 = arith.constant 0 : index
    %183 = vector.load %arg21[%c3_119, %c0_120, %c0_121] : memref<4x8x8xf32, #tpu.memory_space<vmem>>, vector<1x8x8xf32>
    %184 = vector.shape_cast %183 : vector<1x8x8xf32> to vector<8x8xf32>
    %185 = vector.shape_cast %182 : vector<8x8xf32> to vector<1x8x8xf32>
    tpu.vector_store %arg21[%c3_119, %c0_120, %c0_121], %185 {strides = array<i32>} : memref<4x8x8xf32, #tpu.memory_space<vmem>>, vector<1x8x8xf32>,
    %c3_122 = arith.constant 3 : index
    %c0_123 = arith.constant 0 : index
    %c0_124 = arith.constant 0 : index
    %186 = vector.load %arg19[%c3_122, %c0_123, %c0_124] : memref<4x8x1xf32, #tpu.memory_space<vmem>>, vector<1x8x1xf32>
    %187 = vector.shape_cast %186 : vector<1x8x1xf32> to vector<8x1xf32>
    %188 = vector.shape_cast %161 : vector<8x1xf32> to vector<1x8x1xf32>
    tpu.vector_store %arg19[%c3_122, %c0_123, %c0_124], %188 {strides = array<i32>} : memref<4x8x1xf32, #tpu.memory_space<vmem>>, vector<1x8x1xf32>,
    %c0_i32_125 = arith.constant 0 : i32
    %189 = arith.cmpi eq, %arg1, %c0_i32_125 : i32
    %190 = arith.extui %189 : i1 to i32
    %c0_i32_126 = arith.constant 0 : i32
    %191 = arith.cmpi ne, %190, %c0_i32_126 : i32
    scf.if %191 {
      %c0_127 = arith.constant 0 : index
      %c0_128 = arith.constant 0 : index
      %c0_129 = arith.constant 0 : index
      %192 = vector.load %arg20[%c0_127, %c0_128, %c0_129] : memref<4x8x1xf32, #tpu.memory_space<vmem>>, vector<1x8x1xf32>
      %193 = vector.shape_cast %192 : vector<1x8x1xf32> to vector<8x1xf32>
      %194 = tpu.reciprocal %193 {approx = true} : vector<8x1xf32> -> vector<8x1xf32>
      %c0_130 = arith.constant 0 : index
      %c0_131 = arith.constant 0 : index
      %c0_132 = arith.constant 0 : index
      %195 = vector.load %arg21[%c0_130, %c0_131, %c0_132] : memref<4x8x8xf32, #tpu.memory_space<vmem>>, vector<1x8x8xf32>
      %196 = vector.shape_cast %195 : vector<1x8x8xf32> to vector<8x8xf32>
      %197 = vector.broadcast %194 : vector<8x1xf32> to vector<8x8xf32>
      %198 = arith.mulf %196, %197 : vector<8x8xf32>
      %c0_133 = arith.constant 0 : index
      %c0_134 = arith.constant 0 : index
      %199 = vector.load %arg22[%c0_133, %c0_134] : memref<8x32xf32, #tpu.memory_space<vmem>>, vector<8x8xf32>
      tpu.vector_store %arg22[%c0_133, %c0_134], %198 {strides = array<i32>} : memref<8x32xf32, #tpu.memory_space<vmem>>, vector<8x8xf32>,
      %c1_135 = arith.constant 1 : index
      %c0_136 = arith.constant 0 : index
      %c0_137 = arith.constant 0 : index
      %200 = vector.load %arg20[%c1_135, %c0_136, %c0_137] : memref<4x8x1xf32, #tpu.memory_space<vmem>>, vector<1x8x1xf32>
      %201 = vector.shape_cast %200 : vector<1x8x1xf32> to vector<8x1xf32>
      %202 = tpu.reciprocal %201 {approx = true} : vector<8x1xf32> -> vector<8x1xf32>
      %c1_138 = arith.constant 1 : index
      %c0_139 = arith.constant 0 : index
      %c0_140 = arith.constant 0 : index
      %203 = vector.load %arg21[%c1_138, %c0_139, %c0_140] : memref<4x8x8xf32, #tpu.memory_space<vmem>>, vector<1x8x8xf32>
      %204 = vector.shape_cast %203 : vector<1x8x8xf32> to vector<8x8xf32>
      %205 = vector.broadcast %202 : vector<8x1xf32> to vector<8x8xf32>
      %206 = arith.mulf %204, %205 : vector<8x8xf32>
      %c0_141 = arith.constant 0 : index
      %c8_142 = arith.constant 8 : index
      %207 = vector.load %arg22[%c0_141, %c8_142] : memref<8x32xf32, #tpu.memory_space<vmem>>, vector<8x8xf32>
      tpu.vector_store %arg22[%c0_141, %c8_142], %206 {strides = array<i32>} : memref<8x32xf32, #tpu.memory_space<vmem>>, vector<8x8xf32>,
      %c2_143 = arith.constant 2 : index
      %c0_144 = arith.constant 0 : index
      %c0_145 = arith.constant 0 : index
      %208 = vector.load %arg20[%c2_143, %c0_144, %c0_145] : memref<4x8x1xf32, #tpu.memory_space<vmem>>, vector<1x8x1xf32>
      %209 = vector.shape_cast %208 : vector<1x8x1xf32> to vector<8x1xf32>
      %210 = tpu.reciprocal %209 {approx = true} : vector<8x1xf32> -> vector<8x1xf32>
      %c2_146 = arith.constant 2 : index
      %c0_147 = arith.constant 0 : index
      %c0_148 = arith.constant 0 : index
      %211 = vector.load %arg21[%c2_146, %c0_147, %c0_148] : memref<4x8x8xf32, #tpu.memory_space<vmem>>, vector<1x8x8xf32>
      %212 = vector.shape_cast %211 : vector<1x8x8xf32> to vector<8x8xf32>
      %213 = vector.broadcast %210 : vector<8x1xf32> to vector<8x8xf32>
      %214 = arith.mulf %212, %213 : vector<8x8xf32>
      %c0_149 = arith.constant 0 : index
      %c16_150 = arith.constant 16 : index
      %215 = vector.load %arg22[%c0_149, %c16_150] : memref<8x32xf32, #tpu.memory_space<vmem>>, vector<8x8xf32>
      tpu.vector_store %arg22[%c0_149, %c16_150], %214 {strides = array<i32>} : memref<8x32xf32, #tpu.memory_space<vmem>>, vector<8x8xf32>,
      %c3_151 = arith.constant 3 : index
      %c0_152 = arith.constant 0 : index
      %c0_153 = arith.constant 0 : index
      %216 = vector.load %arg20[%c3_151, %c0_152, %c0_153] : memref<4x8x1xf32, #tpu.memory_space<vmem>>, vector<1x8x1xf32>
      %217 = vector.shape_cast %216 : vector<1x8x1xf32> to vector<8x1xf32>
      %218 = tpu.reciprocal %217 {approx = true} : vector<8x1xf32> -> vector<8x1xf32>
      %c3_154 = arith.constant 3 : index
      %c0_155 = arith.constant 0 : index
      %c0_156 = arith.constant 0 : index
      %219 = vector.load %arg21[%c3_154, %c0_155, %c0_156] : memref<4x8x8xf32, #tpu.memory_space<vmem>>, vector<1x8x8xf32>
      %220 = vector.shape_cast %219 : vector<1x8x8xf32> to vector<8x8xf32>
      %221 = vector.broadcast %218 : vector<8x1xf32> to vector<8x8xf32>
      %222 = arith.mulf %220, %221 : vector<8x8xf32>
      %c0_157 = arith.constant 0 : index
      %c24_158 = arith.constant 24 : index
      %223 = vector.load %arg22[%c0_157, %c24_158] : memref<8x32xf32, #tpu.memory_space<vmem>>, vector<8x8xf32>
      tpu.vector_store %arg22[%c0_157, %c24_158], %222 {strides = array<i32>} : memref<8x32xf32, #tpu.memory_space<vmem>>, vector<8x8xf32>,
      %c0_159 = arith.constant 0 : index
      %c0_160 = arith.constant 0 : index
      %224 = vector.load %arg22[%c0_159, %c0_160] : memref<8x32xf32, #tpu.memory_space<vmem>>, vector<8x32xf32>
      %225 = arith.truncf %224 : vector<8x32xf32> to vector<8x32xbf16>
      %c0_161 = arith.constant 0 : index
      %c0_162 = arith.constant 0 : index
      %226 = vector.load %arg12[%c0_161, %c0_162] : memref<32x32xbf16, #tpu.memory_space<vmem>>, vector<32x32xbf16>
      %cst_163 = arith.constant dense<0.000000e+00> : vector<8x32xf32>
      %227 = tpu.matmul %225, %226, %cst_163 {dimension_numbers = #tpu.dot_dimension_numbers<[1], [0], [0], [1], [0, 0, 1, 1], [], []>} : vector<8x32xbf16>, vector<32x32xbf16>, vector<8x32xf32> -> vector<8x32xf32>
      %c0_164 = arith.constant 0 : index
      %c0_165 = arith.constant 0 : index
      %228 = vector.load %arg13[%c0_164, %c0_165] : memref<1x32xf32, #tpu.memory_space<vmem>>, vector<1x32xf32>
      %229 = vector.broadcast %228 : vector<1x32xf32> to vector<8x32xf32>
      %230 = arith.addf %227, %229 : vector<8x32xf32>
      %c0_166 = arith.constant 0 : index
      %c0_167 = arith.constant 0 : index
      %c0_168 = arith.constant 0 : index
      %231 = vector.load %arg5[%c0_166, %c0_167, %c0_168] : memref<1x8x32xf32, #tpu.memory_space<vmem>>, vector<1x8x32xf32>
      %232 = vector.shape_cast %231 : vector<1x8x32xf32> to vector<8x32xf32>
      %233 = arith.addf %230, %232 : vector<8x32xf32>
      %cst_169 = arith.constant dense<0.000000e+00> : vector<8xf32>
      %234 = vector.multi_reduction <add>, %233, %cst_169 [1] : vector<8x32xf32> to vector<8xf32>
      %235 = vector.shape_cast %234 : vector<8xf32> to vector<8x1xf32>
      %cst_170 = arith.constant 3.200000e+01 : f32
      %236 = vector.broadcast %cst_170 : f32 to vector<8x1xf32>
      %237 = arith.divf %235, %236 : vector<8x1xf32>
      %238 = vector.broadcast %237 : vector<8x1xf32> to vector<8x32xf32>
      %239 = arith.subf %233, %238 : vector<8x32xf32>
      %240 = arith.mulf %239, %239 : vector<8x32xf32>
      %cst_171 = arith.constant dense<0.000000e+00> : vector<8xf32>
      %241 = vector.multi_reduction <add>, %240, %cst_171 [1] : vector<8x32xf32> to vector<8xf32>
      %242 = vector.shape_cast %241 : vector<8xf32> to vector<8x1xf32>
      %cst_172 = arith.constant 3.200000e+01 : f32
      %243 = vector.broadcast %cst_172 : f32 to vector<8x1xf32>
      %244 = arith.divf %242, %243 : vector<8x1xf32>
      %245 = vector.broadcast %237 : vector<8x1xf32> to vector<8x32xf32>
      %246 = arith.subf %233, %245 : vector<8x32xf32>
      %cst_173 = arith.constant 9.99999974E-6 : f32
      %247 = vector.broadcast %cst_173 : f32 to vector<8x1xf32>
      %248 = arith.addf %244, %247 : vector<8x1xf32>
      %249 = math.rsqrt %248 : vector<8x1xf32>
      %250 = vector.broadcast %249 : vector<8x1xf32> to vector<8x32xf32>
      %251 = arith.mulf %246, %250 : vector<8x32xf32>
      %c0_174 = arith.constant 0 : index
      %c0_175 = arith.constant 0 : index
      %252 = vector.load %arg14[%c0_174, %c0_175] : memref<1x32xf32, #tpu.memory_space<vmem>>, vector<1x32xf32>
      %253 = vector.broadcast %252 : vector<1x32xf32> to vector<8x32xf32>
      %254 = arith.mulf %251, %253 : vector<8x32xf32>
      %c0_176 = arith.constant 0 : index
      %c0_177 = arith.constant 0 : index
      %255 = vector.load %arg15[%c0_176, %c0_177] : memref<1x32xf32, #tpu.memory_space<vmem>>, vector<1x32xf32>
      %256 = vector.broadcast %255 : vector<1x32xf32> to vector<8x32xf32>
      %257 = arith.addf %254, %256 : vector<8x32xf32>
      %258 = vector.shape_cast %257 : vector<8x32xf32> to vector<1x8x32xf32>
      %c0_178 = arith.constant 0 : index
      %c0_179 = arith.constant 0 : index
      %c0_180 = arith.constant 0 : index
      %259 = vector.load %arg17[%c0_178, %c0_179, %c0_180] : memref<1x8x32xf32, #tpu.memory_space<vmem>>, vector<1x8x32xf32>
      tpu.vector_store %arg17[%c0_178, %c0_179, %c0_180], %258 {strides = array<i32>} : memref<1x8x32xf32, #tpu.memory_space<vmem>>, vector<1x8x32xf32>,
    } else {
    }
    return
  }
  func.func @transform_0(%arg0: i32, %arg1: i32) -> (i32, i32, i32) {
    %c0_i32 = arith.constant 0 : i32
    %c0_i32_0 = arith.constant 0 : i32
    %c0_i32_1 = arith.constant 0 : i32
    return %arg0, %c0_i32, %c0_i32_0 : i32, i32, i32
  }
  func.func @transform_1(%arg0: i32, %arg1: i32) -> (i32, i32, i32) {
    %c0_i32 = arith.constant 0 : i32
    %c0_i32_0 = arith.constant 0 : i32
    return %arg0, %arg1, %c0_i32 : i32, i32, i32
  }
  func.func @transform_2(%arg0: i32, %arg1: i32) -> (i32, i32, i32) {
    %c0_i32 = arith.constant 0 : i32
    %c0_i32_0 = arith.constant 0 : i32
    return %arg0, %arg1, %c0_i32 : i32, i32, i32
  }
  func.func @transform_3(%arg0: i32, %arg1: i32) -> (i32, i32, i32) {
    %c0_i32 = arith.constant 0 : i32
    %c0_i32_0 = arith.constant 0 : i32
    %c0_i32_1 = arith.constant 0 : i32
    return %arg0, %c0_i32, %c0_i32_0 : i32, i32, i32
  }
  func.func @transform_4(%arg0: i32, %arg1: i32) -> (i32, i32) {
    %c0_i32 = arith.constant 0 : i32
    %c0_i32_0 = arith.constant 0 : i32
    %c0_i32_1 = arith.constant 0 : i32
    return %c0_i32, %c0_i32_0 : i32, i32
  }
  func.func @transform_5(%arg0: i32, %arg1: i32) -> (i32, i32) {
    %c0_i32 = arith.constant 0 : i32
    %c0_i32_0 = arith.constant 0 : i32
    %c0_i32_1 = arith.constant 0 : i32
    return %c0_i32, %c0_i32_0 : i32, i32
  }
  func.func @transform_6(%arg0: i32, %arg1: i32) -> (i32, i32) {
    %c0_i32 = arith.constant 0 : i32
    %c0_i32_0 = arith.constant 0 : i32
    %c0_i32_1 = arith.constant 0 : i32
    return %c0_i32, %c0_i32_0 : i32, i32
  }
  func.func @transform_7(%arg0: i32, %arg1: i32) -> (i32, i32) {
    %c0_i32 = arith.constant 0 : i32
    %c0_i32_0 = arith.constant 0 : i32
    %c0_i32_1 = arith.constant 0 : i32
    return %c0_i32, %c0_i32_0 : i32, i32
  }
  func.func @transform_8(%arg0: i32, %arg1: i32) -> (i32, i32) {
    %c0_i32 = arith.constant 0 : i32
    %c0_i32_0 = arith.constant 0 : i32
    %c0_i32_1 = arith.constant 0 : i32
    return %c0_i32, %c0_i32_0 : i32, i32
  }
  func.func @transform_9(%arg0: i32, %arg1: i32) -> (i32, i32) {
    %c0_i32 = arith.constant 0 : i32
    %c0_i32_0 = arith.constant 0 : i32
    %c0_i32_1 = arith.constant 0 : i32
    return %c0_i32, %c0_i32_0 : i32, i32
  }
  func.func @transform_10(%arg0: i32, %arg1: i32) -> (i32, i32) {
    %c0_i32 = arith.constant 0 : i32
    %c0_i32_0 = arith.constant 0 : i32
    %c0_i32_1 = arith.constant 0 : i32
    return %c0_i32, %c0_i32_0 : i32, i32
  }
  func.func @transform_11(%arg0: i32, %arg1: i32) -> (i32, i32) {
    %c0_i32 = arith.constant 0 : i32
    %c0_i32_0 = arith.constant 0 : i32
    %c0_i32_1 = arith.constant 0 : i32
    return %c0_i32, %c0_i32_0 : i32, i32
  }
  func.func @transform_12(%arg0: i32, %arg1: i32) -> (i32, i32) {
    %c0_i32 = arith.constant 0 : i32
    %c0_i32_0 = arith.constant 0 : i32
    %c0_i32_1 = arith.constant 0 : i32
    return %c0_i32, %c0_i32_0 : i32, i32
  }
  func.func @transform_13(%arg0: i32, %arg1: i32) -> (i32, i32) {
    %c0_i32 = arith.constant 0 : i32
    %c0_i32_0 = arith.constant 0 : i32
    %c0_i32_1 = arith.constant 0 : i32
    return %c0_i32, %c0_i32_0 : i32, i32
  }
  func.func @transform_14(%arg0: i32, %arg1: i32) -> (i32, i32, i32) {
    %c0_i32 = arith.constant 0 : i32
    %c0_i32_0 = arith.constant 0 : i32
    %c0_i32_1 = arith.constant 0 : i32
    return %c0_i32, %c0_i32_0, %arg1 : i32, i32, i32
  }
  func.func @transform_15(%arg0: i32, %arg1: i32) -> (i32, i32, i32) {
    %c0_i32 = arith.constant 0 : i32
    %c0_i32_0 = arith.constant 0 : i32
    %c0_i32_1 = arith.constant 0 : i32
    return %arg0, %c0_i32, %c0_i32_0 : i32, i32, i32
  }
}

</mosaic_0001>

<llo_original>
// kernel: tpu_custom_call.1
$region0: #{tpu_custom_call.1}
  #allocation0 [shape = 'u32[]', space=smem, size = 0x4, offset = 0x4, fixed_abs, tag = 'smem constant byte address 0x4 - core index']
  #allocation1 [shape = 'u32[72,128]{1,0:T(1,128)}', space=vmem, size = 0x9000, scoped, tag = 'internal scratch']
  #allocation2 [shape = 'bf16[8,32]{1,0:T(8,128)(2,1)}', space=vmem, size = 0x800, scoped, tag = 'scratch operand']
  #allocation3 [shape = 'f32[4,8,1]{2,1,0:T(8,128)}', space=vmem, size = 0x4000, scoped, tag = 'scratch operand']
  #allocation4 [shape = 'f32[4,8,1]{2,1,0:T(8,128)}', space=vmem, size = 0x4000, scoped, tag = 'scratch operand']
  #allocation5 [shape = 'f32[4,8,8]{2,1,0:T(8,128)}', space=vmem, size = 0x4000, scoped, tag = 'scratch operand']
  #allocation6 [shape = 'f32[8,32]{1,0:T(8,128)}', space=vmem, size = 0x1000, scoped, tag = 'scratch operand']
  %s0 = inlined_call_operand.hbm [shape: f32[2,8,32], index: 0, kind: input, shape index: {}]
  %s1 = inlined_call_operand.hbm [shape: f32[2,8,32], index: 1, kind: input, shape index: {}]
  %s2 = inlined_call_operand.hbm [shape: f32[2,8,32], index: 2, kind: input, shape index: {}]
  %s3 = inlined_call_operand.hbm [shape: f32[2,8,32], index: 3, kind: input, shape index: {}]
  %s4 = inlined_call_operand.hbm [shape: bf16[32,32], index: 4, kind: input, shape index: {}]
  %s5 = inlined_call_operand.vmem [shape: f32[1,32], index: 5, kind: input, shape index: {}]
  %s6 = inlined_call_operand.hbm [shape: bf16[32,32], index: 6, kind: input, shape index: {}]
  %s7 = inlined_call_operand.vmem [shape: f32[1,32], index: 7, kind: input, shape index: {}]
  %s8 = inlined_call_operand.hbm [shape: bf16[32,32], index: 8, kind: input, shape index: {}]
  %s9 = inlined_call_operand.vmem [shape: f32[1,32], index: 9, kind: input, shape index: {}]
  %s10 = inlined_call_operand.hbm [shape: bf16[32,32], index: 10, kind: input, shape index: {}]
  %s11 = inlined_call_operand.vmem [shape: f32[1,32], index: 11, kind: input, shape index: {}]
  %s12 = inlined_call_operand.vmem [shape: f32[1,32], index: 12, kind: input, shape index: {}]
  %s13 = inlined_call_operand.vmem [shape: f32[1,32], index: 13, kind: input, shape index: {}]
  %s14 = inlined_call_operand.vmem [shape: bf16[1,8,8], index: 14, kind: input, shape index: {}]
  %s15 = inlined_call_operand.hbm [shape: f32[2,8,32], index: 15, kind: output, shape index: {}]
  %s16 = sld [smem:[#allocation0]]
  $region133: #{tpu_custom_call.1} parent=0
    _
  %s18 = ssub.s32 1, %s16
  %s19 = scalar_select 0, %s18, %s16
  $region1: #{tpu_custom_call.1} parent=0
    #allocation7 [shape = 'u8[8192]{0}', space=vmem, size = 0x2000, scoped, tag = 'input window, operand 0']
    #allocation8 [shape = 's32[2]{0}', space=sflag, size = 0x8, scoped, tag = 'scoped memory for tpu_custom_call.1']
    #allocation9 [shape = 's32[2]{0}', space=sflag, size = 0x8, scoped, tag = 'scoped memory for tpu_custom_call.1']
    #allocation10 [shape = 'u8[8192]{0}', space=vmem, size = 0x2000, scoped, tag = 'input window, operand 1']
    #allocation11 [shape = 's32[2]{0}', space=sflag, size = 0x8, scoped, tag = 'scoped memory for tpu_custom_call.1']
    #allocation12 [shape = 'u8[8192]{0}', space=vmem, size = 0x2000, scoped, tag = 'input window, operand 2']
    #allocation13 [shape = 'u8[8192]{0}', space=vmem, size = 0x2000, scoped, tag = 'input window, operand 3']
    #allocation14 [shape = 's32[2]{0}', space=sflag, size = 0x8, scoped, tag = 'scoped memory for tpu_custom_call.1']
    #allocation15 [shape = 'u8[8192]{0}', space=vmem, size = 0x2000, scoped, tag = 'input window, operand 4, single buffered']
    #allocation16 [shape = 'u8[8192]{0}', space=vmem, size = 0x2000, scoped, tag = 'input window, operand 6, single buffered']
    #allocation17 [shape = 's32[1]{0}', space=sflag, size = 0x4, scoped, tag = 'scoped memory for tpu_custom_call.1']
    #allocation18 [shape = 'u8[8192]{0}', space=vmem, size = 0x2000, scoped, tag = 'input window, operand 8, single buffered']
    #allocation19 [shape = 'u8[8192]{0}', space=vmem, size = 0x2000, scoped, tag = 'input window, operand 10, single buffered']
    #allocation20 [shape = 's32[1]{0}', space=sflag, size = 0x4, scoped, tag = 'scoped memory for tpu_custom_call.1']
    #allocation21 [shape = 'u8[8192]{0}', space=vmem, size = 0x2000, scoped, tag = 'output window, operand 0']
    %20 = vsyncpa [#allocation8], 0
    %s21 = scalar_lea.sflag [#allocation8], 1
    %22 = vsyncpa %s21, 0
    %23 = vsyncpa [#allocation11], 0
    %s24 = scalar_lea.sflag [#allocation11], 1
    %25 = vsyncpa %s24, 0
    %26 = vsyncpa [#allocation14], 0
    %s27 = scalar_lea.sflag [#allocation14], 1
    %28 = vsyncpa %s27, 0
    %29 = vsyncpa [#allocation17], 0
    %30 = vsyncpa [#allocation20], 0
    %31 = vsyncpa [#allocation9], 0
    %s32 = scalar_lea.sflag [#allocation9], 1
    %33 = vsyncpa %s32, 0
    loop: start=0, step=1, limit=4
    $region2: #{tpu_custom_call.1} parent=1 // loop_pre_header
      _
    $region3: #{tpu_custom_call.1} parent=1 // loop_header
      %s35 = sphi 0, %s39
      %p36 = scmp.ge.s32.totalorder %s35, 4
      %s42 = sphi 0, %s54
      %s43 = sphi 0, %s50
      %s44 = sphi 0, %s42
      %s45 = sphi 0, %s43
      %s46 = sphi 0, %s44
      %s47 = sphi 0, %s45
      %s57 = sphi 0, %s59
      %s60 = sphi 0, %s57
      %s61 = sphi 0, %s60
      %s77 = sphi 0, %s61
      %s85 = sphi 0, %s87
      %s88 = sphi 0, %s85
      %s89 = sphi 0, %s88
      %s105 = sphi 0, %s89
      %s113 = sphi 0, %s115
      %s116 = sphi 0, %s113
      %s117 = sphi 0, %s116
      %s133 = sphi 0, %s117
      %s139 = sphi 0, %s141
      %s142 = sphi 0, %s139
      %s143 = sphi 0, %s142
      %s159 = sphi 0, %s143
      %s163 = sphi 0, %s163
      %s165 = sphi 0, %s163
      %s166 = sphi 0, %s165
      %s180 = sphi 0, %s166
      %s184 = sphi 0, %s184
      %s186 = sphi 0, %s184
      %s187 = sphi 0, %s186
      %s201 = sphi 0, %s187
      %s205 = sphi 0, %s205
      %s207 = sphi 0, %s205
      %s208 = sphi 0, %s207
      %s222 = sphi 0, %s208
      %s226 = sphi 0, %s226
      %s228 = sphi 0, %s226
      %s229 = sphi 0, %s228
      %s243 = sphi 0, %s229
      %s247 = sphi 0, %s247
      %s249 = sphi 0, %s247
      %s250 = sphi 0, %s249
      %s264 = sphi 0, %s250
      %s268 = sphi 0, %s268
      %s270 = sphi 0, %s268
      %s271 = sphi 0, %s270
      %s285 = sphi 0, %s271
      %s289 = sphi 0, %s289
      %s291 = sphi 0, %s289
      %s292 = sphi 0, %s291
      %s306 = sphi 0, %s292
      %s310 = sphi 0, %s310
      %s312 = sphi 0, %s310
      %s313 = sphi 0, %s312
      %s327 = sphi 0, %s313
      %s331 = sphi 0, %s331
      %s333 = sphi 0, %s331
      %s334 = sphi 0, %s333
      %s348 = sphi 0, %s334
      %s352 = sphi 0, %s352
      %s354 = sphi 0, %s352
      %s355 = sphi 0, %s354
      %s369 = sphi 0, %s355
      %s375 = sphi 0, %s377
      %s378 = sphi 0, %s375
      %s379 = sphi 0, %s378
      %s395 = sphi 0, %s379
      %s401 = sphi 0, %s403
      %s404 = sphi 0, %s401
      %s405 = sphi 0, %s404
      %s421 = sphi 0, %s405
    $region4: #{tpu_custom_call.1} parent=1 // loop_header_branch
      %38 = sbr.rel (%p36) target = $region8
    $region5: #{tpu_custom_call.1} parent=1 // loop_body
      %s40 = ssub.s32 %s35, 1
      %s41 = ssub.s32 %s35, 2
      %s48 = sadd.s32 1, %s43
      %p49 = scmp.ge.s32.totalorder %s48, 1
      %s50 = scalar_select %p49, 0, %s48
      %s51 = sadd.s32 1, %s42
      %s52 = scalar_select %p49, %s51, %s42
      %p53 = scmp.ge.s32.totalorder %s52, 2
      %s54 = scalar_select %p53, 0, %s52
      %s55 = ssub.s32 %s42, %s54
      %p56 = scmp.eq.s32.totalorder %s55, 0
      %s58 = sadd.s32 %s57, 1
      %s59 = scalar_select %p56, %s57, %s58
      %p62 = pneg %p56
      %p63 = scmp.eq.s32.totalorder %s35, 1
      %p64 = por %p62, %p63
      %p65 = scmp.ne.s32.totalorder %s57, %s60
      %p66 = scmp.eq.s32.totalorder %s35, 0
      %p67 = por %p65, %p66
      %p68 = scmp.ne.s32.totalorder %s57, %s60
      %p69 = scmp.eq.s32.totalorder %s40, 1
      %p70 = por %p68, %p69
      %p71 = scmp.ne.s32.totalorder %s60, %s61
      %p72 = scmp.eq.s32.totalorder %s40, 0
      %p73 = por %p71, %p72
      %p74 = scmp.ne.s32.totalorder %s60, %s61
      %p75 = scmp.eq.s32.totalorder %s41, 1
      %p76 = por %p74, %p75
      %p78 = scmp.ne.s32.totalorder %s61, %s77
      %p79 = scmp.eq.s32.totalorder %s41, 0
      %p80 = por %p78, %p79
      %s81 = ssub.s32 %s42, %s54
      %s82 = ssub.s32 %s43, %s50
      %s83 = sor.u32 %s81, %s82
      %p84 = scmp.eq.s32.totalorder %s83, 0
      %s86 = sadd.s32 %s85, 1
      %s87 = scalar_select %p84, %s85, %s86
      %p90 = pneg %p84
      %p91 = scmp.eq.s32.totalorder %s35, 1
      %p92 = por %p90, %p91
      %p93 = scmp.ne.s32.totalorder %s85, %s88
      %p94 = scmp.eq.s32.totalorder %s35, 0
      %p95 = por %p93, %p94
      %p96 = scmp.ne.s32.totalorder %s85, %s88
      %p97 = scmp.eq.s32.totalorder %s40, 1
      %p98 = por %p96, %p97
      %p99 = scmp.ne.s32.totalorder %s88, %s89
      %p100 = scmp.eq.s32.totalorder %s40, 0
      %p101 = por %p99, %p100
      %p102 = scmp.ne.s32.totalorder %s88, %s89
      %p103 = scmp.eq.s32.totalorder %s41, 1
      %p104 = por %p102, %p103
      %p106 = scmp.ne.s32.totalorder %s89, %s105
      %p107 = scmp.eq.s32.totalorder %s41, 0
      %p108 = por %p106, %p107
      %s109 = ssub.s32 %s42, %s54
      %s110 = ssub.s32 %s43, %s50
      %s111 = sor.u32 %s109, %s110
      %p112 = scmp.eq.s32.totalorder %s111, 0
      %s114 = sadd.s32 %s113, 1
      %s115 = scalar_select %p112, %s113, %s114
      %p118 = pneg %p112
      %p119 = scmp.eq.s32.totalorder %s35, 1
      %p120 = por %p118, %p119
      %p121 = scmp.ne.s32.totalorder %s113, %s116
      %p122 = scmp.eq.s32.totalorder %s35, 0
      %p123 = por %p121, %p122
      %p124 = scmp.ne.s32.totalorder %s113, %s116
      %p125 = scmp.eq.s32.totalorder %s40, 1
      %p126 = por %p124, %p125
      %p127 = scmp.ne.s32.totalorder %s116, %s117
      %p128 = scmp.eq.s32.totalorder %s40, 0
      %p129 = por %p127, %p128
      %p130 = scmp.ne.s32.totalorder %s116, %s117
      %p131 = scmp.eq.s32.totalorder %s41, 1
      %p132 = por %p130, %p131
      %p134 = scmp.ne.s32.totalorder %s117, %s133
      %p135 = scmp.eq.s32.totalorder %s41, 0
      %p136 = por %p134, %p135
      %s137 = ssub.s32 %s42, %s54
      %p138 = scmp.eq.s32.totalorder %s137, 0
      %s140 = sadd.s32 %s139, 1
      %s141 = scalar_select %p138, %s139, %s140
      %p144 = pneg %p138
      %p145 = scmp.eq.s32.totalorder %s35, 1
      %p146 = por %p144, %p145
      %p147 = scmp.ne.s32.totalorder %s139, %s142
      %p148 = scmp.eq.s32.totalorder %s35, 0
      %p149 = por %p147, %p148
      %p150 = scmp.ne.s32.totalorder %s139, %s142
      %p151 = scmp.eq.s32.totalorder %s40, 1
      %p152 = por %p150, %p151
      %p153 = scmp.ne.s32.totalorder %s142, %s143
      %p154 = scmp.eq.s32.totalorder %s40, 0
      %p155 = por %p153, %p154
      %p156 = scmp.ne.s32.totalorder %s142, %s143
      %p157 = scmp.eq.s32.totalorder %s41, 1
      %p158 = por %p156, %p157
      %p160 = scmp.ne.s32.totalorder %s143, %s159
      %p161 = scmp.eq.s32.totalorder %s41, 0
      %p162 = por %p160, %p161
      %s164 = sadd.s32 %s163, 1
      %p167 = scmp.eq.s32.totalorder %s35, 1
      %p168 = scmp.ne.s32.totalorder %s163, %s165
      %p169 = scmp.eq.s32.totalorder %s35, 0
      %p170 = por %p168, %p169
      %p171 = scmp.ne.s32.totalorder %s163, %s165
      %p172 = scmp.eq.s32.totalorder %s40, 1
      %p173 = por %p171, %p172
      %p174 = scmp.ne.s32.totalorder %s165, %s166
      %p175 = scmp.eq.s32.totalorder %s40, 0
      %p176 = por %p174, %p175
      %p177 = scmp.ne.s32.totalorder %s165, %s166
      %p178 = scmp.eq.s32.totalorder %s41, 1
      %p179 = por %p177, %p178
      %p181 = scmp.ne.s32.totalorder %s166, %s180
      %p182 = scmp.eq.s32.totalorder %s41, 0
      %p183 = por %p181, %p182
      %s185 = sadd.s32 %s184, 1
      %p188 = scmp.eq.s32.totalorder %s35, 1
      %p189 = scmp.ne.s32.totalorder %s184, %s186
      %p190 = scmp.eq.s32.totalorder %s35, 0
      %p191 = por %p189, %p190
      %p192 = scmp.ne.s32.totalorder %s184, %s186
      %p193 = scmp.eq.s32.totalorder %s40, 1
      %p194 = por %p192, %p193
      %p195 = scmp.ne.s32.totalorder %s186, %s187
      %p196 = scmp.eq.s32.totalorder %s40, 0
      %p197 = por %p195, %p196
      %p198 = scmp.ne.s32.totalorder %s186, %s187
      %p199 = scmp.eq.s32.totalorder %s41, 1
      %p200 = por %p198, %p199
      %p202 = scmp.ne.s32.totalorder %s187, %s201
      %p203 = scmp.eq.s32.totalorder %s41, 0
      %p204 = por %p202, %p203
      %s206 = sadd.s32 %s205, 1
      %p209 = scmp.eq.s32.totalorder %s35, 1
      %p210 = scmp.ne.s32.totalorder %s205, %s207
      %p211 = scmp.eq.s32.totalorder %s35, 0
      %p212 = por %p210, %p211
      %p213 = scmp.ne.s32.totalorder %s205, %s207
      %p214 = scmp.eq.s32.totalorder %s40, 1
      %p215 = por %p213, %p214
      %p216 = scmp.ne.s32.totalorder %s207, %s208
      %p217 = scmp.eq.s32.totalorder %s40, 0
      %p218 = por %p216, %p217
      %p219 = scmp.ne.s32.totalorder %s207, %s208
      %p220 = scmp.eq.s32.totalorder %s41, 1
      %p221 = por %p219, %p220
      %p223 = scmp.ne.s32.totalorder %s208, %s222
      %p224 = scmp.eq.s32.totalorder %s41, 0
      %p225 = por %p223, %p224
      %s227 = sadd.s32 %s226, 1
      %p230 = scmp.eq.s32.totalorder %s35, 1
      %p231 = scmp.ne.s32.totalorder %s226, %s228
      %p232 = scmp.eq.s32.totalorder %s35, 0
      %p233 = por %p231, %p232
      %p234 = scmp.ne.s32.totalorder %s226, %s228
      %p235 = scmp.eq.s32.totalorder %s40, 1
      %p236 = por %p234, %p235
      %p237 = scmp.ne.s32.totalorder %s228, %s229
      %p238 = scmp.eq.s32.totalorder %s40, 0
      %p239 = por %p237, %p238
      %p240 = scmp.ne.s32.totalorder %s228, %s229
      %p241 = scmp.eq.s32.totalorder %s41, 1
      %p242 = por %p240, %p241
      %p244 = scmp.ne.s32.totalorder %s229, %s243
      %p245 = scmp.eq.s32.totalorder %s41, 0
      %p246 = por %p244, %p245
      %s248 = sadd.s32 %s247, 1
      %p251 = scmp.eq.s32.totalorder %s35, 1
      %p252 = scmp.ne.s32.totalorder %s247, %s249
      %p253 = scmp.eq.s32.totalorder %s35, 0
      %p254 = por %p252, %p253
      %p255 = scmp.ne.s32.totalorder %s247, %s249
      %p256 = scmp.eq.s32.totalorder %s40, 1
      %p257 = por %p255, %p256
      %p258 = scmp.ne.s32.totalorder %s249, %s250
      %p259 = scmp.eq.s32.totalorder %s40, 0
      %p260 = por %p258, %p259
      %p261 = scmp.ne.s32.totalorder %s249, %s250
      %p262 = scmp.eq.s32.totalorder %s41, 1
      %p263 = por %p261, %p262
      %p265 = scmp.ne.s32.totalorder %s250, %s264
      %p266 = scmp.eq.s32.totalorder %s41, 0
      %p267 = por %p265, %p266
      %s269 = sadd.s32 %s268, 1
      %p272 = scmp.eq.s32.totalorder %s35, 1
      %p273 = scmp.ne.s32.totalorder %s268, %s270
      %p274 = scmp.eq.s32.totalorder %s35, 0
      %p275 = por %p273, %p274
      %p276 = scmp.ne.s32.totalorder %s268, %s270
      %p277 = scmp.eq.s32.totalorder %s40, 1
      %p278 = por %p276, %p277
      %p279 = scmp.ne.s32.totalorder %s270, %s271
      %p280 = scmp.eq.s32.totalorder %s40, 0
      %p281 = por %p279, %p280
      %p282 = scmp.ne.s32.totalorder %s270, %s271
      %p283 = scmp.eq.s32.totalorder %s41, 1
      %p284 = por %p282, %p283
      %p286 = scmp.ne.s32.totalorder %s271, %s285
      %p287 = scmp.eq.s32.totalorder %s41, 0
      %p288 = por %p286, %p287
      %s290 = sadd.s32 %s289, 1
      %p293 = scmp.eq.s32.totalorder %s35, 1
      %p294 = scmp.ne.s32.totalorder %s289, %s291
      %p295 = scmp.eq.s32.totalorder %s35, 0
      %p296 = por %p294, %p295
      %p297 = scmp.ne.s32.totalorder %s289, %s291
      %p298 = scmp.eq.s32.totalorder %s40, 1
      %p299 = por %p297, %p298
      %p300 = scmp.ne.s32.totalorder %s291, %s292
      %p301 = scmp.eq.s32.totalorder %s40, 0
      %p302 = por %p300, %p301
      %p303 = scmp.ne.s32.totalorder %s291, %s292
      %p304 = scmp.eq.s32.totalorder %s41, 1
      %p305 = por %p303, %p304
      %p307 = scmp.ne.s32.totalorder %s292, %s306
      %p308 = scmp.eq.s32.totalorder %s41, 0
      %p309 = por %p307, %p308
      %s311 = sadd.s32 %s310, 1
      %p314 = scmp.eq.s32.totalorder %s35, 1
      %p315 = scmp.ne.s32.totalorder %s310, %s312
      %p316 = scmp.eq.s32.totalorder %s35, 0
      %p317 = por %p315, %p316
      %p318 = scmp.ne.s32.totalorder %s310, %s312
      %p319 = scmp.eq.s32.totalorder %s40, 1
      %p320 = por %p318, %p319
      %p321 = scmp.ne.s32.totalorder %s312, %s313
      %p322 = scmp.eq.s32.totalorder %s40, 0
      %p323 = por %p321, %p322
      %p324 = scmp.ne.s32.totalorder %s312, %s313
      %p325 = scmp.eq.s32.totalorder %s41, 1
      %p326 = por %p324, %p325
      %p328 = scmp.ne.s32.totalorder %s313, %s327
      %p329 = scmp.eq.s32.totalorder %s41, 0
      %p330 = por %p328, %p329
      %s332 = sadd.s32 %s331, 1
      %p335 = scmp.eq.s32.totalorder %s35, 1
      %p336 = scmp.ne.s32.totalorder %s331, %s333
      %p337 = scmp.eq.s32.totalorder %s35, 0
      %p338 = por %p336, %p337
      %p339 = scmp.ne.s32.totalorder %s331, %s333
      %p340 = scmp.eq.s32.totalorder %s40, 1
      %p341 = por %p339, %p340
      %p342 = scmp.ne.s32.totalorder %s333, %s334
      %p343 = scmp.eq.s32.totalorder %s40, 0
      %p344 = por %p342, %p343
      %p345 = scmp.ne.s32.totalorder %s333, %s334
      %p346 = scmp.eq.s32.totalorder %s41, 1
      %p347 = por %p345, %p346
      %p349 = scmp.ne.s32.totalorder %s334, %s348
      %p350 = scmp.eq.s32.totalorder %s41, 0
      %p351 = por %p349, %p350
      %s353 = sadd.s32 %s352, 1
      %p356 = scmp.eq.s32.totalorder %s35, 1
      %p357 = scmp.ne.s32.totalorder %s352, %s354
      %p358 = scmp.eq.s32.totalorder %s35, 0
      %p359 = por %p357, %p358
      %p360 = scmp.ne.s32.totalorder %s352, %s354
      %p361 = scmp.eq.s32.totalorder %s40, 1
      %p362 = por %p360, %p361
      %p363 = scmp.ne.s32.totalorder %s354, %s355
      %p364 = scmp.eq.s32.totalorder %s40, 0
      %p365 = por %p363, %p364
      %p366 = scmp.ne.s32.totalorder %s354, %s355
      %p367 = scmp.eq.s32.totalorder %s41, 1
      %p368 = por %p366, %p367
      %p370 = scmp.ne.s32.totalorder %s355, %s369
      %p371 = scmp.eq.s32.totalorder %s41, 0
      %p372 = por %p370, %p371
      %s373 = ssub.s32 %s43, %s50
      %p374 = scmp.eq.s32.totalorder %s373, 0
      %s376 = sadd.s32 %s375, 1
      %s377 = scalar_select %p374, %s375, %s376
      %p380 = pneg %p374
      %p381 = scmp.eq.s32.totalorder %s35, 1
      %p382 = por %p380, %p381
      %p383 = scmp.ne.s32.totalorder %s375, %s378
      %p384 = scmp.eq.s32.totalorder %s35, 0
      %p385 = por %p383, %p384
      %p386 = scmp.ne.s32.totalorder %s375, %s378
      %p387 = scmp.eq.s32.totalorder %s40, 1
      %p388 = por %p386, %p387
      %p389 = scmp.ne.s32.totalorder %s378, %s379
      %p390 = scmp.eq.s32.totalorder %s40, 0
      %p391 = por %p389, %p390
      %p392 = scmp.ne.s32.totalorder %s378, %s379
      %p393 = scmp.eq.s32.totalorder %s41, 1
      %p394 = por %p392, %p393
      %p396 = scmp.ne.s32.totalorder %s379, %s395
      %p397 = scmp.eq.s32.totalorder %s41, 0
      %p398 = por %p396, %p397
      %s399 = ssub.s32 %s42, %s54
      %p400 = scmp.eq.s32.totalorder %s399, 0
      %s402 = sadd.s32 %s401, 1
      %s403 = scalar_select %p400, %s401, %s402
      %p406 = pneg %p400
      %p407 = scmp.eq.s32.totalorder %s35, 1
      %p408 = por %p406, %p407
      %p409 = scmp.ne.s32.totalorder %s401, %s404
      %p410 = scmp.eq.s32.totalorder %s35, 0
      %p411 = por %p409, %p410
      %p412 = scmp.ne.s32.totalorder %s401, %s404
      %p413 = scmp.eq.s32.totalorder %s40, 1
      %p414 = por %p412, %p413
      %p415 = scmp.ne.s32.totalorder %s404, %s405
      %p416 = scmp.eq.s32.totalorder %s40, 0
      %p417 = por %p415, %p416
      %p418 = scmp.ne.s32.totalorder %s404, %s405
      %p419 = scmp.eq.s32.totalorder %s41, 1
      %p420 = por %p418, %p419
      %p422 = scmp.ne.s32.totalorder %s405, %s421
      %p423 = scmp.eq.s32.totalorder %s41, 0
      %p424 = por %p422, %p423
      %p425 = scmp.le.s32.totalorder 1, %s35
      %p426 = scmp.lt.s32.totalorder %s35, 3
      %p427 = pnand %p425, %p426
      %p428 = pneg %p427
      // Predicated region
      $region9: #{tpu_custom_call.1} parent=5 // pred_check
        _
      $region10: #{tpu_custom_call.1} parent=5 // pred_check_branch
        %430 = sbr.rel (%p427) target = $region12
      $region11: #{tpu_custom_call.1} parent=5 // pred_region
        %s431 = ssub.s32 %s35, 1
        // Predicated region
        $region13: #{tpu_custom_call.1} parent=11 // pred_check
          %p432 = pneg %p176
        $region14: #{tpu_custom_call.1} parent=11 // pred_check_branch
          %434 = sbr.rel (%p432) target = $region16
        $region15: #{tpu_custom_call.1} parent=11 // pred_region
          %436 = vsyncadd [#allocation14], 0
          %s437 = sshll.u32 %s4, 4
          %s438 = int_to_ptr.hbm [resolvable:$true] %s437
          %s439 = sshll.u32 [#allocation15], 4
          %s440 = int_to_ptr.vmem [resolvable:$true] %s439
          %445 = dma.hbm_to_vmem [thread:$0]  %s438, 256, %s440, [#allocation14], 64, 64, 4
        $region16: #{tpu_custom_call.1} parent=11 // pred_fallthru
          _
        // Predicated region
        $region17: #{tpu_custom_call.1} parent=11 // pred_check
          %p446 = pneg %p197
        $region18: #{tpu_custom_call.1} parent=11 // pred_check_branch
          %448 = sbr.rel (%p446) target = $region20
        $region19: #{tpu_custom_call.1} parent=11 // pred_region
          _
        $region20: #{tpu_custom_call.1} parent=11 // pred_fallthru
          _
        // Predicated region
        $region21: #{tpu_custom_call.1} parent=11 // pred_check
          %p449 = pneg %p218
        $region22: #{tpu_custom_call.1} parent=11 // pred_check_branch
          %451 = sbr.rel (%p449) target = $region24
        $region23: #{tpu_custom_call.1} parent=11 // pred_region
          %453 = vsyncadd [#allocation17], 0
          %s454 = sshll.u32 %s6, 4
          %s455 = int_to_ptr.hbm [resolvable:$true] %s454
          %s456 = sshll.u32 [#allocation16], 4
          %s457 = int_to_ptr.vmem [resolvable:$true] %s456
          %462 = dma.hbm_to_vmem [thread:$0]  %s455, 256, %s457, [#allocation17], 64, 64, 4
        $region24: #{tpu_custom_call.1} parent=11 // pred_fallthru
          _
        // Predicated region
        $region25: #{tpu_custom_call.1} parent=11 // pred_check
          %p463 = pneg %p239
        $region26: #{tpu_custom_call.1} parent=11 // pred_check_branch
          %465 = sbr.rel (%p463) target = $region28
        $region27: #{tpu_custom_call.1} parent=11 // pred_region
          _
        $region28: #{tpu_custom_call.1} parent=11 // pred_fallthru
          _
        // Predicated region
        $region29: #{tpu_custom_call.1} parent=11 // pred_check
          %p466 = pneg %p260
        $region30: #{tpu_custom_call.1} parent=11 // pred_check_branch
          %468 = sbr.rel (%p466) target = $region32
        $region31: #{tpu_custom_call.1} parent=11 // pred_region
          %470 = vsyncadd [#allocation17], 0
          %s471 = sshll.u32 %s8, 4
          %s472 = int_to_ptr.hbm [resolvable:$true] %s471
          %s473 = sshll.u32 [#allocation18], 4
          %s474 = int_to_ptr.vmem [resolvable:$true] %s473
          %479 = dma.hbm_to_vmem [thread:$0]  %s472, 256, %s474, [#allocation17], 64, 64, 4
        $region32: #{tpu_custom_call.1} parent=11 // pred_fallthru
          _
        // Predicated region
        $region33: #{tpu_custom_call.1} parent=11 // pred_check
          %p480 = pneg %p281
        $region34: #{tpu_custom_call.1} parent=11 // pred_check_branch
          %482 = sbr.rel (%p480) target = $region36
        $region35: #{tpu_custom_call.1} parent=11 // pred_region
          _
        $region36: #{tpu_custom_call.1} parent=11 // pred_fallthru
          _
        // Predicated region
        $region37: #{tpu_custom_call.1} parent=11 // pred_check
          %p483 = pneg %p302
        $region38: #{tpu_custom_call.1} parent=11 // pred_check_branch
          %485 = sbr.rel (%p483) target = $region40
        $region39: #{tpu_custom_call.1} parent=11 // pred_region
          %487 = vsyncadd [#allocation20], 0
          %s488 = sshll.u32 %s10, 4
          %s489 = int_to_ptr.hbm [resolvable:$true] %s488
          %s490 = sshll.u32 [#allocation19], 4
          %s491 = int_to_ptr.vmem [resolvable:$true] %s490
          %496 = dma.hbm_to_vmem [thread:$0]  %s489, 256, %s491, [#allocation20], 64, 64, 4
        $region40: #{tpu_custom_call.1} parent=11 // pred_fallthru
          _
        // Predicated region
        $region41: #{tpu_custom_call.1} parent=11 // pred_check
          %p497 = pneg %p323
        $region42: #{tpu_custom_call.1} parent=11 // pred_check_branch
          %499 = sbr.rel (%p497) target = $region44
        $region43: #{tpu_custom_call.1} parent=11 // pred_region
          _
        $region44: #{tpu_custom_call.1} parent=11 // pred_fallthru
          _
        // Predicated region
        $region45: #{tpu_custom_call.1} parent=11 // pred_check
          %p500 = pneg %p344
        $region46: #{tpu_custom_call.1} parent=11 // pred_check_branch
          %502 = sbr.rel (%p500) target = $region48
        $region47: #{tpu_custom_call.1} parent=11 // pred_region
          _
        $region48: #{tpu_custom_call.1} parent=11 // pred_fallthru
          _
        // Predicated region
        $region49: #{tpu_custom_call.1} parent=11 // pred_check
          %p503 = pneg %p365
        $region50: #{tpu_custom_call.1} parent=11 // pred_check_branch
          %505 = sbr.rel (%p503) target = $region52
        $region51: #{tpu_custom_call.1} parent=11 // pred_region
          _
        $region52: #{tpu_custom_call.1} parent=11 // pred_fallthru
          _
        // Predicated region
        $region53: #{tpu_custom_call.1} parent=11 // pred_check
          %p506 = pneg %p391
        $region54: #{tpu_custom_call.1} parent=11 // pred_check_branch
          %508 = sbr.rel (%p506) target = $region56
        $region55: #{tpu_custom_call.1} parent=11 // pred_region
          %p509 = scmp.lt.s32.totalorder %s45, 0
          %s510 = scalar_select %p509, %s45, 0
          %s511 = smul.addr %s510, 4
          %s512 = scalar_lea.vmem %s14, %s511
        $region56: #{tpu_custom_call.1} parent=11 // pred_fallthru
          _
      $region12: #{tpu_custom_call.1} parent=5 // pred_fallthru
        _
      %p513 = scmp.lt.s32.totalorder %s35, 2
      // Predicated region
      $region57: #{tpu_custom_call.1} parent=5 // pred_check
        %p514 = pneg %p513
      $region58: #{tpu_custom_call.1} parent=5 // pred_check_branch
        %516 = sbr.rel (%p514) target = $region60
      $region59: #{tpu_custom_call.1} parent=5 // pred_region
        // Predicated region
        $region61: #{tpu_custom_call.1} parent=59 // pred_check
          %p517 = pneg %p67
        $region62: #{tpu_custom_call.1} parent=59 // pred_check_branch
          %519 = sbr.rel (%p517) target = $region64
        $region63: #{tpu_custom_call.1} parent=59 // pred_region
          %s520 = sand.u32 %s57, 1
          %s521 = scalar_lea.sflag [#allocation8], %s520
          %s522 = sand.u32 %s57, 1
          %s523 = smul.addr %s522, 8
          %s524 = scalar_lea.vmem [#allocation7], %s523
          %526 = vsyncadd %s521, 0
          %s527 = smul.addr %s42, 8
          %s528 = scalar_lea.hbm %s0, %s527
          %s530 = sshll.u32 %s528, 4
          %s531 = int_to_ptr.hbm [resolvable:$true] %s530
          %s532 = sshll.u32 %s524, 4
          %s533 = int_to_ptr.vmem [resolvable:$true] %s532
          %535 = dma.hbm_to_vmem [thread:$0]  %s531, 128, %s533, %s521
        $region64: #{tpu_custom_call.1} parent=59 // pred_fallthru
          _
        // Predicated region
        $region65: #{tpu_custom_call.1} parent=59 // pred_check
          %p536 = pneg %p95
        $region66: #{tpu_custom_call.1} parent=59 // pred_check_branch
          %538 = sbr.rel (%p536) target = $region68
        $region67: #{tpu_custom_call.1} parent=59 // pred_region
          %s539 = sand.u32 %s35, 1
          %s540 = scalar_lea.sflag [#allocation11], %s539
          %s541 = sand.u32 %s85, 1
          %s542 = smul.addr %s541, 8
          %s543 = scalar_lea.vmem [#allocation10], %s542
          %545 = vsyncadd %s540, 0
          %s546 = sadd.s32 %s43, %s42
          %s547 = smul.addr %s546, 8
          %s548 = scalar_lea.hbm %s1, %s547
          %s550 = sshll.u32 %s548, 4
          %s551 = int_to_ptr.hbm [resolvable:$true] %s550
          %s552 = sshll.u32 %s543, 4
          %s553 = int_to_ptr.vmem [resolvable:$true] %s552
          %555 = dma.hbm_to_vmem [thread:$0]  %s551, 128, %s553, %s540
        $region68: #{tpu_custom_call.1} parent=59 // pred_fallthru
          _
        // Predicated region
        $region69: #{tpu_custom_call.1} parent=59 // pred_check
          %p556 = pneg %p123
        $region70: #{tpu_custom_call.1} parent=59 // pred_check_branch
          %558 = sbr.rel (%p556) target = $region72
        $region71: #{tpu_custom_call.1} parent=59 // pred_region
          %s559 = sand.u32 %s35, 1
          %s560 = scalar_lea.sflag [#allocation11], %s559
          %s561 = sand.u32 %s113, 1
          %s562 = smul.addr %s561, 8
          %s563 = scalar_lea.vmem [#allocation12], %s562
          %565 = vsyncadd %s560, 0
          %s566 = sadd.s32 %s43, %s42
          %s567 = smul.addr %s566, 8
          %s568 = scalar_lea.hbm %s2, %s567
          %s570 = sshll.u32 %s568, 4
          %s571 = int_to_ptr.hbm [resolvable:$true] %s570
          %s572 = sshll.u32 %s563, 4
          %s573 = int_to_ptr.vmem [resolvable:$true] %s572
          %575 = dma.hbm_to_vmem [thread:$0]  %s571, 128, %s573, %s560
        $region72: #{tpu_custom_call.1} parent=59 // pred_fallthru
          _
        // Predicated region
        $region73: #{tpu_custom_call.1} parent=59 // pred_check
          %p576 = pneg %p149
        $region74: #{tpu_custom_call.1} parent=59 // pred_check_branch
          %578 = sbr.rel (%p576) target = $region76
        $region75: #{tpu_custom_call.1} parent=59 // pred_region
          %s579 = sand.u32 %s35, 1
          %s580 = scalar_lea.sflag [#allocation14], %s579
          %s581 = sand.u32 %s139, 1
          %s582 = smul.addr %s581, 8
          %s583 = scalar_lea.vmem [#allocation13], %s582
          %585 = vsyncadd %s580, 0
          %s586 = smul.addr %s42, 8
          %s587 = scalar_lea.hbm %s3, %s586
          %s589 = sshll.u32 %s587, 4
          %s590 = int_to_ptr.hbm [resolvable:$true] %s589
          %s591 = sshll.u32 %s583, 4
          %s592 = int_to_ptr.vmem [resolvable:$true] %s591
          %594 = dma.hbm_to_vmem [thread:$0]  %s590, 128, %s592, %s580
        $region76: #{tpu_custom_call.1} parent=59 // pred_fallthru
          _
      $region60: #{tpu_custom_call.1} parent=5 // pred_fallthru
        _
      %p595 = scmp.le.s32.totalorder 1, %s35
      %p596 = scmp.lt.s32.totalorder %s35, 3
      %p597 = pnand %p595, %p596
      %p598 = pneg %p597
      // Predicated region
      $region77: #{tpu_custom_call.1} parent=5 // pred_check
        _
      $region78: #{tpu_custom_call.1} parent=5 // pred_check_branch
        %600 = sbr.rel (%p597) target = $region80
      $region79: #{tpu_custom_call.1} parent=5 // pred_region
        %s601 = ssub.s32 %s35, 1
        %s602 = sand.u32 %s60, 1
        %s603 = scalar_lea.sflag [#allocation8], %s602
        %s604 = sand.u32 %s60, 1
        %s605 = smul.addr %s604, 8
        %s606 = scalar_lea.vmem [#allocation7], %s605
        // Predicated region
        $region81: #{tpu_custom_call.1} parent=79 // pred_check
          %p607 = pneg %p73
        $region82: #{tpu_custom_call.1} parent=79 // pred_check_branch
          %609 = sbr.rel (%p607) target = $region84
        $region83: #{tpu_custom_call.1} parent=79 // pred_region
          %611 = dma.done %s603, 128
        $region84: #{tpu_custom_call.1} parent=79 // pred_fallthru
          _
        %s612 = sand.u32 %s40, 1
        %s613 = scalar_lea.sflag [#allocation11], %s612
        %s614 = sand.u32 %s88, 1
        %s615 = smul.addr %s614, 8
        %s616 = scalar_lea.vmem [#allocation10], %s615
        // Predicated region
        $region85: #{tpu_custom_call.1} parent=79 // pred_check
          %p617 = pneg %p101
        $region86: #{tpu_custom_call.1} parent=79 // pred_check_branch
          %619 = sbr.rel (%p617) target = $region88
        $region87: #{tpu_custom_call.1} parent=79 // pred_region
          %621 = dma.done %s613, 128
        $region88: #{tpu_custom_call.1} parent=79 // pred_fallthru
          _
        %s622 = sand.u32 %s40, 1
        %s623 = scalar_lea.sflag [#allocation11], %s622
        %s624 = sand.u32 %s116, 1
        %s625 = smul.addr %s624, 8
        %s626 = scalar_lea.vmem [#allocation12], %s625
        // Predicated region
        $region89: #{tpu_custom_call.1} parent=79 // pred_check
          %p627 = pneg %p129
        $region90: #{tpu_custom_call.1} parent=79 // pred_check_branch
          %629 = sbr.rel (%p627) target = $region92
        $region91: #{tpu_custom_call.1} parent=79 // pred_region
          %631 = dma.done %s623, 128
        $region92: #{tpu_custom_call.1} parent=79 // pred_fallthru
          _
        %s632 = sand.u32 %s40, 1
        %s633 = scalar_lea.sflag [#allocation14], %s632
        %s634 = sand.u32 %s142, 1
        %s635 = smul.addr %s634, 8
        %s636 = scalar_lea.vmem [#allocation13], %s635
        // Predicated region
        $region93: #{tpu_custom_call.1} parent=79 // pred_check
          %p637 = pneg %p155
        $region94: #{tpu_custom_call.1} parent=79 // pred_check_branch
          %639 = sbr.rel (%p637) target = $region96
        $region95: #{tpu_custom_call.1} parent=79 // pred_region
          %641 = dma.done %s633, 128
        $region96: #{tpu_custom_call.1} parent=79 // pred_fallthru
          _
        // Predicated region
        $region97: #{tpu_custom_call.1} parent=79 // pred_check
          %p642 = pneg %p176
        $region98: #{tpu_custom_call.1} parent=79 // pred_check_branch
          %644 = sbr.rel (%p642) target = $region100
        $region99: #{tpu_custom_call.1} parent=79 // pred_region
          %646 = dma.done [#allocation14], 256
        $region100: #{tpu_custom_call.1} parent=79 // pred_fallthru
          _
        // Predicated region
        $region101: #{tpu_custom_call.1} parent=79 // pred_check
          %p647 = pneg %p218
        $region102: #{tpu_custom_call.1} parent=79 // pred_check_branch
          %649 = sbr.rel (%p647) target = $region104
        $region103: #{tpu_custom_call.1} parent=79 // pred_region
          %651 = dma.done [#allocation17], 256
        $region104: #{tpu_custom_call.1} parent=79 // pred_fallthru
          _
        // Predicated region
        $region105: #{tpu_custom_call.1} parent=79 // pred_check
          %p652 = pneg %p260
        $region106: #{tpu_custom_call.1} parent=79 // pred_check_branch
          %654 = sbr.rel (%p652) target = $region108
        $region107: #{tpu_custom_call.1} parent=79 // pred_region
          %656 = dma.done [#allocation17], 256
        $region108: #{tpu_custom_call.1} parent=79 // pred_fallthru
          _
        // Predicated region
        $region109: #{tpu_custom_call.1} parent=79 // pred_check
          %p657 = pneg %p302
        $region110: #{tpu_custom_call.1} parent=79 // pred_check_branch
          %659 = sbr.rel (%p657) target = $region112
        $region111: #{tpu_custom_call.1} parent=79 // pred_region
          %661 = dma.done [#allocation20], 256
        $region112: #{tpu_custom_call.1} parent=79 // pred_fallthru
          _
        %s662 = sand.u32 %s60, 1
        %s663 = scalar_lea.sflag [#allocation8], %s662
        %s664 = sand.u32 %s60, 1
        %s665 = smul.addr %s664, 8
        %s666 = scalar_lea.vmem [#allocation7], %s665
        %p667 = pneg %p73
        %p668 = pneg %p70
        %s669 = sand.u32 %s40, 1
        %s670 = scalar_lea.sflag [#allocation11], %s669
        %s671 = sand.u32 %s88, 1
        %s672 = smul.addr %s671, 8
        %s673 = scalar_lea.vmem [#allocation10], %s672
        %p674 = pneg %p101
        %p675 = pneg %p98
        %s676 = sand.u32 %s40, 1
        %s677 = scalar_lea.sflag [#allocation11], %s676
        %s678 = sand.u32 %s116, 1
        %s679 = smul.addr %s678, 8
        %s680 = scalar_lea.vmem [#allocation12], %s679
        %p681 = pneg %p129
        %p682 = pneg %p126
        %s683 = sand.u32 %s40, 1
        %s684 = scalar_lea.sflag [#allocation14], %s683
        %s685 = sand.u32 %s142, 1
        %s686 = smul.addr %s685, 8
        %s687 = scalar_lea.vmem [#allocation13], %s686
        %p688 = pneg %p155
        %p689 = pneg %p152
        %p690 = pneg %p176
        %p691 = pneg %p173
        %p692 = pneg %p197
        %p693 = pneg %p194
        %p694 = pneg %p218
        %p695 = pneg %p215
        %p696 = pneg %p239
        %p697 = pneg %p236
        %p698 = pneg %p260
        %p699 = pneg %p257
        %p700 = pneg %p281
        %p701 = pneg %p278
        %p702 = pneg %p302
        %p703 = pneg %p299
        %p704 = pneg %p323
        %p705 = pneg %p320
        %p706 = pneg %p344
        %p707 = pneg %p341
        %p708 = pneg %p365
        %p709 = pneg %p362
        %p710 = scmp.lt.s32.totalorder %s45, 0
        %s711 = scalar_select %p710, %s45, 0
        %s712 = smul.addr %s711, 4
        %s713 = scalar_lea.vmem %s14, %s712
        %p714 = pneg %p391
        %p715 = pneg %p388
        %p716 = pneg %p417
        %p717 = pneg %p414
        %s718 = sand.u32 %s404, 1
        %s719 = scalar_lea.sflag [#allocation9], %s718
        %s720 = sand.u32 %s404, 1
        %s721 = smul.addr %s720, 8
        %s722 = scalar_lea.vmem [#allocation21], %s721
        %p723 = scmp.lt.s32.totalorder %s45, 0
        %s724 = scalar_select %p723, %s45, 0
        %s725 = smul.addr %s724, 4
        %s726 = scalar_lea.vmem %s14, %s725
        %p728 = scmp.eq.s32.totalorder %s45, 0
        // Predicated region
        $region113: #{tpu_custom_call.1} parent=79 // pred_check
          %p729 = pneg %p728
        $region114: #{tpu_custom_call.1} parent=79 // pred_check_branch
          %731 = sbr.rel (%p729) target = $region116
        $region115: #{tpu_custom_call.1} parent=79 // pred_region
          %v732 = vld [vmem:[%s606] sm:$0xff]
          %v733 = vpack.c.bf16 %v732, %v732
          %v734 = vld [vmem:[#allocation15] sm:$0xf]
          %v735 = vld [vmem:[#allocation15 + $0x4] sm:$0xf]
          %v736 = vld [vmem:[#allocation15 + $0x8] sm:$0xf]
          %v737 = vld [vmem:[#allocation15 + $0xc] sm:$0xf]
          %v738 = vld [vmem:[%s5] sm:$0x1]
          %v740 = vperm.slane %v738, 0
          %v746 = vunpack.c.l.b16 %v734
          %v747 = vunpack.c.l.b16 %v735
          %v748 = vunpack.c.l.b16 %v736
          %v749 = vunpack.c.l.b16 %v737
          %v750 = vpack.c.b16 %v747, %v746
          %v751 = vpack.c.b16 %v749, %v748
          %vm754 = vcmask 261120
          %v756 = vsel %vm754, %v733, 0
          %758 = vmatpush.bf16.msra.mxu0 0
          %759 = vmatpush.bf16.msra.mxu0 0
          %760 = vmatpush.bf16.msra.mxu0 0
          %761 = vmatpush.bf16.msra.mxu0 0
          %762 = vmatpush.bf16.msra.mxu0 0
          %763 = vmatpush.bf16.msra.mxu0 0
          %764 = vmatpush.bf16.msra.mxu0 %v751
          %765 = vmatpush.bf16.msra.mxu0 %v750
          %766 = vmatmul.bf16.gmra.mxu0 %v756
          %v767 = vpop.f32.mrf.mxu0
          %v768 = vadd.f32 %v740, %v767
          %v769 = vpop.f32.mrf.mxu0
          %770 = vdwg.mxu0
          %v771 = vmul.f32 %v768, 0.35355338
          %v772 = vpack.c.bf16 %v771, %v771
          %vm773 = vcmask 257024
          %774 = vst.msk [vmem:[#allocation2] sm:$0xf] %vm773, %v772
          %vm775 = vcmask 7168
          %776 = vst.msk [vmem:[#allocation3] sm:$0xff] %vm775, -1e+30
          %777 = vst.msk [vmem:[#allocation3 + $0x8] sm:$0xff] %vm775, -1e+30
          %778 = vst.msk [vmem:[#allocation3 + $0x10] sm:$0xff] %vm775, -1e+30
          %779 = vst.msk [vmem:[#allocation3 + $0x18] sm:$0xff] %vm775, -1e+30
          %780 = vst.msk [vmem:[#allocation4] sm:$0xff] %vm775, 0.0
          %781 = vst.msk [vmem:[#allocation4 + $0x8] sm:$0xff] %vm775, 0.0
          %782 = vst.msk [vmem:[#allocation4 + $0x10] sm:$0xff] %vm775, 0.0
          %783 = vst.msk [vmem:[#allocation4 + $0x18] sm:$0xff] %vm775, 0.0
          %vm784 = vcmask 64512
          %785 = vst.msk [vmem:[#allocation5] sm:$0xff] %vm784, 0.0
          %786 = vst.msk [vmem:[#allocation5 + $0x8] sm:$0xff] %vm784, 0.0
          %787 = vst.msk [vmem:[#allocation5 + $0x10] sm:$0xff] %vm784, 0.0
          %788 = vst.msk [vmem:[#allocation5 + $0x18] sm:$0xff] %vm784, 0.0
        $region116: #{tpu_custom_call.1} parent=79 // pred_fallthru
          _
        %v789 = vld [vmem:[%s616] sm:$0xff]
        %v790 = vpack.c.bf16 %v789, %v789
        %v791 = vld [vmem:[#allocation16] sm:$0xf]
        %v792 = vld [vmem:[#allocation16 + $0x4] sm:$0xf]
        %v793 = vld [vmem:[#allocation16 + $0x8] sm:$0xf]
        %v794 = vld [vmem:[#allocation16 + $0xc] sm:$0xf]
        %v795 = vld [vmem:[%s7] sm:$0x1]
        %v797 = vperm.slane %v795, 0
        %v803 = vunpack.c.l.b16 %v791
        %v804 = vunpack.c.l.b16 %v792
        %v805 = vunpack.c.l.b16 %v793
        %v806 = vunpack.c.l.b16 %v794
        %v807 = vpack.c.b16 %v804, %v803
        %v808 = vpack.c.b16 %v806, %v805
        %vm811 = vcmask 261120
        %v813 = vsel %vm811, %v790, 0
        %815 = vmatpush.bf16.msra.mxu0 0
        %816 = vmatpush.bf16.msra.mxu0 0
        %817 = vmatpush.bf16.msra.mxu0 0
        %818 = vmatpush.bf16.msra.mxu0 0
        %819 = vmatpush.bf16.msra.mxu0 0
        %820 = vmatpush.bf16.msra.mxu0 0
        %821 = vmatpush.bf16.msra.mxu0 %v808
        %822 = vmatpush.bf16.msra.mxu0 %v807
        %823 = vmatmul.bf16.gmra.mxu0 %v813
        %v824 = vpop.f32.mrf.mxu0
        %v825 = vadd.f32 %v797, %v824
        %v826 = vpop.f32.mrf.mxu0
        %827 = vdwg.mxu0
        %v828 = vpack.c.bf16 %v825, %v825
        %v829 = vld [vmem:[%s626] sm:$0xff]
        %v830 = vpack.c.bf16 %v829, %v829
        %v831 = vld [vmem:[#allocation18] sm:$0xf]
        %v832 = vld [vmem:[#allocation18 + $0x4] sm:$0xf]
        %v833 = vld [vmem:[#allocation18 + $0x8] sm:$0xf]
        %v834 = vld [vmem:[#allocation18 + $0xc] sm:$0xf]
        %v835 = vld [vmem:[%s9] sm:$0x1]
        %v837 = vperm.slane %v835, 0
        %v843 = vunpack.c.l.b16 %v831
        %v844 = vunpack.c.l.b16 %v832
        %v845 = vunpack.c.l.b16 %v833
        %v846 = vunpack.c.l.b16 %v834
        %v847 = vpack.c.b16 %v844, %v843
        %v848 = vpack.c.b16 %v846, %v845
        %v852 = vsel %vm811, %v830, 0
        %854 = vmatpush.bf16.msra.mxu0 0
        %855 = vmatpush.bf16.msra.mxu0 0
        %856 = vmatpush.bf16.msra.mxu0 0
        %857 = vmatpush.bf16.msra.mxu0 0
        %858 = vmatpush.bf16.msra.mxu0 0
        %859 = vmatpush.bf16.msra.mxu0 0
        %860 = vmatpush.bf16.msra.mxu0 %v848
        %861 = vmatpush.bf16.msra.mxu0 %v847
        %862 = vmatmul.bf16.gmra.mxu0 %v852
        %v863 = vpop.f32.mrf.mxu0
        %v864 = vadd.f32 %v837, %v863
        %v865 = vpop.f32.mrf.mxu0
        %866 = vdwg.mxu0
        %v867 = vpack.c.bf16 %v864, %v864
        %v868 = vld [vmem:[#allocation2] sm:$0xf]
        %vm869 = vcmask 64512
        %v871 = vsel %vm869, %v868, 0
        %v874 = vsel %vm869, %v828, 0
        %876 = vmatpush.bf16.xpose.msra.mxu0 0
        %877 = vmatpush.bf16.xpose.msra.mxu0 0
        %878 = vmatpush.bf16.xpose.msra.mxu0 0
        %879 = vmatpush.bf16.xpose.msra.mxu0 0
        %880 = vmatpush.bf16.xpose.msra.mxu0 0
        %881 = vmatpush.bf16.xpose.msra.mxu0 0
        %882 = vmatpush.bf16.xpose.msra.mxu0 0
        %883 = vmatpush.bf16.xpose.msra.mxu0 %v874
        %884 = vmatmul.bf16.gmra.mxu0 %v871
        %v885 = vpop.f32.mrf.mxu0
        %v886 = vadd.f32 0.0, %v885
        %v887 = vpop.f32.mrf.mxu0
        %888 = vdwg.mxu0
        %v889 = vld [vmem:[%s726] sm:$0xf]
        %v890 = vunpack.c.l.bf16 %v889
        %vm891 = vcmp.ne.f32.partialorder %v890, 0.0
        %v892 = vsel %vm891, %v886, -1e+09
        %v893 = vld [vmem:[#allocation3] sm:$0xff]
        %v894 = vsel %vm869, %v892, -inf
        %895 = vmax.xlane.f32.xlu0 %v894
        %v896 = vpop.xlane.xlu0 %895
        %v897 = vmax.f32 %v893, %v896
        %v898 = vsub.f32 %v893, %v897
        %v899 = vmul.f32 %v898, 1.442695
        %v900 = vpow.pop %v899
        %902 = vset.pattern.permute.xlu0 0
        %903 = vperm.xlu0 %902, %v897
        %v904 = vpop.permute.xlu0 %903
        %v906 = vsub.f32 %v892, %v904
        %v907 = vmul.f32 %v906, 1.442695
        %v908 = vpow.pop %v907
        %v909 = vld [vmem:[#allocation4] sm:$0xff]
        %v910 = vmul.f32 %v900, %v909
        %v911 = vsel %vm869, %v908, 0.0
        %912 = vadd.xlane.f32.xlu0 %v911
        %v913 = vpop.xlane.xlu0 %912
        %v914 = vadd.f32 %v910, %v913
        %vm915 = vcmask 7168
        %916 = vst.msk [vmem:[#allocation4] sm:$0xff] %vm915, %v914
        %v917 = vld [vmem:[#allocation5] sm:$0xff]
        %919 = vset.pattern.permute.xlu0 0
        %920 = vperm.xlu0 %919, %v900
        %v921 = vpop.permute.xlu0 %920
        %v923 = vmul.f32 %v921, %v917
        %v924 = vpack.c.bf16 %v908, %v908
        %v926 = vsel %vm869, %v924, 0
        %vm928 = vcmask 1043456
        %v930 = vsel %vm928, %v867, 0
        %932 = vmatpush.bf16.msra.mxu0 0
        %933 = vmatpush.bf16.msra.mxu0 0
        %934 = vmatpush.bf16.msra.mxu0 0
        %935 = vmatpush.bf16.msra.mxu0 0
        %936 = vmatpush.bf16.msra.mxu0 0
        %937 = vmatpush.bf16.msra.mxu0 0
        %938 = vmatpush.bf16.msra.mxu0 0
        %939 = vmatpush.bf16.msra.mxu0 %v930
        %940 = vmatmul.bf16.gmra.mxu0 %v926
        %v941 = vpop.f32.mrf.mxu0
        %v942 = vadd.f32 0.0, %v941
        %v943 = vpop.f32.mrf.mxu0
        %944 = vdwg.mxu0
        %v945 = vadd.f32 %v923, %v942
        %946 = vst.msk [vmem:[#allocation5] sm:$0xff] %vm869, %v945
        %947 = vst.msk [vmem:[#allocation3] sm:$0xff] %vm915, %v897
        %v948 = vld [vmem:[#allocation2] sm:$0xf]
        %v950 = vunpack.c.l.b16 %v948
        %v951 = vpack.c.b16 %v950, %v950
        %952 = vrot.lane.b32.xlu0 %v951, 120
        %v953 = vpop.permute.xlu0 %952
        %v955 = vunpack.c.l.b16 %v828
        %v956 = vpack.c.b16 %v955, %v955
        %957 = vrot.lane.b32.xlu0 %v956, 120
        %v958 = vpop.permute.xlu0 %957
        %v960 = vsel %vm869, %v953, 0
        %v963 = vsel %vm869, %v958, 0
        %965 = vmatpush.bf16.xpose.msra.mxu0 0
        %966 = vmatpush.bf16.xpose.msra.mxu0 0
        %967 = vmatpush.bf16.xpose.msra.mxu0 0
        %968 = vmatpush.bf16.xpose.msra.mxu0 0
        %969 = vmatpush.bf16.xpose.msra.mxu0 0
        %970 = vmatpush.bf16.xpose.msra.mxu0 0
        %971 = vmatpush.bf16.xpose.msra.mxu0 0
        %972 = vmatpush.bf16.xpose.msra.mxu0 %v963
        %973 = vmatmul.bf16.gmra.mxu0 %v960
        %v974 = vpop.f32.mrf.mxu0
        %v975 = vadd.f32 0.0, %v974
        %v976 = vpop.f32.mrf.mxu0
        %977 = vdwg.mxu0
        %v978 = vld [vmem:[%s726] sm:$0xf]
        %v979 = vunpack.c.l.bf16 %v978
        %vm980 = vcmp.ne.f32.partialorder %v979, 0.0
        %v981 = vsel %vm980, %v975, -1e+09
        %s982 = scalar_lea.vmem [#allocation3], 8
        %v983 = vld [vmem:[%s982] sm:$0xff]
        %v984 = vsel %vm869, %v981, -inf
        %985 = vmax.xlane.f32.xlu0 %v984
        %v986 = vpop.xlane.xlu0 %985
        %v987 = vmax.f32 %v983, %v986
        %v988 = vsub.f32 %v983, %v987
        %v989 = vmul.f32 %v988, 1.442695
        %v990 = vpow.pop %v989
        %992 = vset.pattern.permute.xlu0 0
        %993 = vperm.xlu0 %992, %v987
        %v994 = vpop.permute.xlu0 %993
        %v996 = vsub.f32 %v981, %v994
        %v997 = vmul.f32 %v996, 1.442695
        %v998 = vpow.pop %v997
        %s999 = scalar_lea.vmem [#allocation4], 8
        %v1000 = vld [vmem:[%s999] sm:$0xff]
        %v1001 = vmul.f32 %v990, %v1000
        %v1002 = vsel %vm869, %v998, 0.0
        %1003 = vadd.xlane.f32.xlu0 %v1002
        %v1004 = vpop.xlane.xlu0 %1003
        %v1005 = vadd.f32 %v1001, %v1004
        %1006 = vst.msk [vmem:[%s999] sm:$0xff] %vm915, %v1005
        %s1007 = scalar_lea.vmem [#allocation5], 8
        %v1008 = vld [vmem:[%s1007] sm:$0xff]
        %1010 = vset.pattern.permute.xlu0 0
        %1011 = vperm.xlu0 %1010, %v990
        %v1012 = vpop.permute.xlu0 %1011
        %v1014 = vmul.f32 %v1012, %v1008
        %v1015 = vpack.c.bf16 %v998, %v998
        %v1017 = vunpack.c.l.b16 %v867
        %v1018 = vpack.c.b16 %v1017, %v1017
        %1019 = vrot.lane.b32.xlu0 %v1018, 120
        %v1020 = vpop.permute.xlu0 %1019
        %v1022 = vsel %vm869, %v1015, 0
        %v1025 = vsel %vm928, %v1020, 0
        %1027 = vmatpush.bf16.msra.mxu0 0
        %1028 = vmatpush.bf16.msra.mxu0 0
        %1029 = vmatpush.bf16.msra.mxu0 0
        %1030 = vmatpush.bf16.msra.mxu0 0
        %1031 = vmatpush.bf16.msra.mxu0 0
        %1032 = vmatpush.bf16.msra.mxu0 0
        %1033 = vmatpush.bf16.msra.mxu0 0
        %1034 = vmatpush.bf16.msra.mxu0 %v1025
        %1035 = vmatmul.bf16.gmra.mxu0 %v1022
        %v1036 = vpop.f32.mrf.mxu0
        %v1037 = vadd.f32 0.0, %v1036
        %v1038 = vpop.f32.mrf.mxu0
        %1039 = vdwg.mxu0
        %v1040 = vadd.f32 %v1014, %v1037
        %1041 = vst.msk [vmem:[%s1007] sm:$0xff] %vm869, %v1040
        %1042 = vst.msk [vmem:[%s982] sm:$0xff] %vm915, %v987
        %v1043 = vld [vmem:[#allocation2] sm:$0xf]
        %v1045 = vunpack.c.l.b16 %v1043
        %v1046 = vpack.c.b16 %v1045, %v1045
        %1047 = vrot.lane.b32.xlu0 %v1046, 112
        %v1048 = vpop.permute.xlu0 %1047
        %1049 = vrot.lane.b32.xlu0 %v956, 112
        %v1050 = vpop.permute.xlu0 %1049
        %v1052 = vsel %vm869, %v1048, 0
        %v1055 = vsel %vm869, %v1050, 0
        %1057 = vmatpush.bf16.xpose.msra.mxu0 0
        %1058 = vmatpush.bf16.xpose.msra.mxu0 0
        %1059 = vmatpush.bf16.xpose.msra.mxu0 0
        %1060 = vmatpush.bf16.xpose.msra.mxu0 0
        %1061 = vmatpush.bf16.xpose.msra.mxu0 0
        %1062 = vmatpush.bf16.xpose.msra.mxu0 0
        %1063 = vmatpush.bf16.xpose.msra.mxu0 0
        %1064 = vmatpush.bf16.xpose.msra.mxu0 %v1055
        %1065 = vmatmul.bf16.gmra.mxu0 %v1052
        %v1066 = vpop.f32.mrf.mxu0
        %v1067 = vadd.f32 0.0, %v1066
        %v1068 = vpop.f32.mrf.mxu0
        %1069 = vdwg.mxu0
        %v1070 = vld [vmem:[%s726] sm:$0xf]
        %v1071 = vunpack.c.l.bf16 %v1070
        %vm1072 = vcmp.ne.f32.partialorder %v1071, 0.0
        %v1073 = vsel %vm1072, %v1067, -1e+09
        %s1074 = scalar_lea.vmem [#allocation3], 16
        %v1075 = vld [vmem:[%s1074] sm:$0xff]
        %v1076 = vsel %vm869, %v1073, -inf
        %1077 = vmax.xlane.f32.xlu0 %v1076
        %v1078 = vpop.xlane.xlu0 %1077
        %v1079 = vmax.f32 %v1075, %v1078
        %v1080 = vsub.f32 %v1075, %v1079
        %v1081 = vmul.f32 %v1080, 1.442695
        %v1082 = vpow.pop %v1081
        %1084 = vset.pattern.permute.xlu0 0
        %1085 = vperm.xlu0 %1084, %v1079
        %v1086 = vpop.permute.xlu0 %1085
        %v1088 = vsub.f32 %v1073, %v1086
        %v1089 = vmul.f32 %v1088, 1.442695
        %v1090 = vpow.pop %v1089
        %s1091 = scalar_lea.vmem [#allocation4], 16
        %v1092 = vld [vmem:[%s1091] sm:$0xff]
        %v1093 = vmul.f32 %v1082, %v1092
        %v1094 = vsel %vm869, %v1090, 0.0
        %1095 = vadd.xlane.f32.xlu0 %v1094
        %v1096 = vpop.xlane.xlu0 %1095
        %v1097 = vadd.f32 %v1093, %v1096
        %1098 = vst.msk [vmem:[%s1091] sm:$0xff] %vm915, %v1097
        %s1099 = scalar_lea.vmem [#allocation5], 16
        %v1100 = vld [vmem:[%s1099] sm:$0xff]
        %1102 = vset.pattern.permute.xlu0 0
        %1103 = vperm.xlu0 %1102, %v1082
        %v1104 = vpop.permute.xlu0 %1103
        %v1106 = vmul.f32 %v1104, %v1100
        %v1107 = vpack.c.bf16 %v1090, %v1090
        %1108 = vrot.lane.b32.xlu0 %v1018, 112
        %v1109 = vpop.permute.xlu0 %1108
        %v1111 = vsel %vm869, %v1107, 0
        %v1114 = vsel %vm928, %v1109, 0
        %1116 = vmatpush.bf16.msra.mxu0 0
        %1117 = vmatpush.bf16.msra.mxu0 0
        %1118 = vmatpush.bf16.msra.mxu0 0
        %1119 = vmatpush.bf16.msra.mxu0 0
        %1120 = vmatpush.bf16.msra.mxu0 0
        %1121 = vmatpush.bf16.msra.mxu0 0
        %1122 = vmatpush.bf16.msra.mxu0 0
        %1123 = vmatpush.bf16.msra.mxu0 %v1114
        %1124 = vmatmul.bf16.gmra.mxu0 %v1111
        %v1125 = vpop.f32.mrf.mxu0
        %v1126 = vadd.f32 0.0, %v1125
        %v1127 = vpop.f32.mrf.mxu0
        %1128 = vdwg.mxu0
        %v1129 = vadd.f32 %v1106, %v1126
        %1130 = vst.msk [vmem:[%s1099] sm:$0xff] %vm869, %v1129
        %1131 = vst.msk [vmem:[%s1074] sm:$0xff] %vm915, %v1079
        %v1132 = vld [vmem:[#allocation2] sm:$0xf]
        %v1134 = vunpack.c.l.b16 %v1132
        %v1135 = vpack.c.b16 %v1134, %v1134
        %1136 = vrot.lane.b32.xlu0 %v1135, 104
        %v1137 = vpop.permute.xlu0 %1136
        %1138 = vrot.lane.b32.xlu0 %v956, 104
        %v1139 = vpop.permute.xlu0 %1138
        %v1141 = vsel %vm869, %v1137, 0
        %v1144 = vsel %vm869, %v1139, 0
        %1146 = vmatpush.bf16.xpose.msra.mxu0 0
        %1147 = vmatpush.bf16.xpose.msra.mxu0 0
        %1148 = vmatpush.bf16.xpose.msra.mxu0 0
        %1149 = vmatpush.bf16.xpose.msra.mxu0 0
        %1150 = vmatpush.bf16.xpose.msra.mxu0 0
        %1151 = vmatpush.bf16.xpose.msra.mxu0 0
        %1152 = vmatpush.bf16.xpose.msra.mxu0 0
        %1153 = vmatpush.bf16.xpose.msra.mxu0 %v1144
        %1154 = vmatmul.bf16.gmra.mxu0 %v1141
        %v1155 = vpop.f32.mrf.mxu0
        %v1156 = vadd.f32 0.0, %v1155
        %v1157 = vpop.f32.mrf.mxu0
        %1158 = vdwg.mxu0
        %v1159 = vld [vmem:[%s726] sm:$0xf]
        %v1160 = vunpack.c.l.bf16 %v1159
        %vm1161 = vcmp.ne.f32.partialorder %v1160, 0.0
        %v1162 = vsel %vm1161, %v1156, -1e+09
        %s1163 = scalar_lea.vmem [#allocation3], 24
        %v1164 = vld [vmem:[%s1163] sm:$0xff]
        %v1165 = vsel %vm869, %v1162, -inf
        %1166 = vmax.xlane.f32.xlu0 %v1165
        %v1167 = vpop.xlane.xlu0 %1166
        %v1168 = vmax.f32 %v1164, %v1167
        %v1169 = vsub.f32 %v1164, %v1168
        %v1170 = vmul.f32 %v1169, 1.442695
        %v1171 = vpow.pop %v1170
        %1173 = vset.pattern.permute.xlu0 0
        %1174 = vperm.xlu0 %1173, %v1168
        %v1175 = vpop.permute.xlu0 %1174
        %v1177 = vsub.f32 %v1162, %v1175
        %v1178 = vmul.f32 %v1177, 1.442695
        %v1179 = vpow.pop %v1178
        %s1180 = scalar_lea.vmem [#allocation4], 24
        %v1181 = vld [vmem:[%s1180] sm:$0xff]
        %v1182 = vmul.f32 %v1171, %v1181
        %v1183 = vsel %vm869, %v1179, 0.0
        %1184 = vadd.xlane.f32.xlu0 %v1183
        %v1185 = vpop.xlane.xlu0 %1184
        %v1186 = vadd.f32 %v1182, %v1185
        %1187 = vst.msk [vmem:[%s1180] sm:$0xff] %vm915, %v1186
        %s1188 = scalar_lea.vmem [#allocation5], 24
        %v1189 = vld [vmem:[%s1188] sm:$0xff]
        %1191 = vset.pattern.permute.xlu0 0
        %1192 = vperm.xlu0 %1191, %v1171
        %v1193 = vpop.permute.xlu0 %1192
        %v1195 = vmul.f32 %v1193, %v1189
        %v1196 = vpack.c.bf16 %v1179, %v1179
        %1197 = vrot.lane.b32.xlu0 %v1018, 104
        %v1198 = vpop.permute.xlu0 %1197
        %v1200 = vsel %vm869, %v1196, 0
        %v1203 = vsel %vm928, %v1198, 0
        %1205 = vmatpush.bf16.msra.mxu0 0
        %1206 = vmatpush.bf16.msra.mxu0 0
        %1207 = vmatpush.bf16.msra.mxu0 0
        %1208 = vmatpush.bf16.msra.mxu0 0
        %1209 = vmatpush.bf16.msra.mxu0 0
        %1210 = vmatpush.bf16.msra.mxu0 0
        %1211 = vmatpush.bf16.msra.mxu0 0
        %1212 = vmatpush.bf16.msra.mxu0 %v1203
        %1213 = vmatmul.bf16.gmra.mxu0 %v1200
        %v1214 = vpop.f32.mrf.mxu0
        %v1215 = vadd.f32 0.0, %v1214
        %v1216 = vpop.f32.mrf.mxu0
        %1217 = vdwg.mxu0
        %v1218 = vadd.f32 %v1195, %v1215
        %1219 = vst.msk [vmem:[%s1188] sm:$0xff] %vm869, %v1218
        %1220 = vst.msk [vmem:[%s1163] sm:$0xff] %vm915, %v1168
        // Predicated region
        $region117: #{tpu_custom_call.1} parent=79 // pred_check
          %p1221 = pneg %p728
        $region118: #{tpu_custom_call.1} parent=79 // pred_check_branch
          %1223 = sbr.rel (%p1221) target = $region120
        $region119: #{tpu_custom_call.1} parent=79 // pred_region
          %v1224 = vld [vmem:[#allocation4] sm:$0xff]
          %v1225 = vrcp.pop %v1224
          %v1226 = vld [vmem:[#allocation5] sm:$0xff]
          %1228 = vset.pattern.permute.xlu0 0
          %1229 = vperm.xlu0 %1228, %v1225
          %v1230 = vpop.permute.xlu0 %1229
          %v1232 = vmul.f32 %v1226, %v1230
          %1233 = vst.msk [vmem:[#allocation6] sm:$0xff] %vm869, %v1232
          %v1234 = vld [vmem:[%s999] sm:$0xff]
          %v1235 = vrcp.pop %v1234
          %v1236 = vld [vmem:[%s1007] sm:$0xff]
          %1238 = vset.pattern.permute.xlu0 0
          %1239 = vperm.xlu0 %1238, %v1235
          %v1240 = vpop.permute.xlu0 %1239
          %v1242 = vmul.f32 %v1236, %v1240
          %1244 = vrot.lane.b32.xlu0 %v1242, 8
          %v1245 = vpop.permute.xlu0 %1244
          %vm1247 = vcmask 130112
          %1248 = vst.msk [vmem:[#allocation6] sm:$0xff] %vm1247, %v1245
          %v1249 = vld [vmem:[%s1091] sm:$0xff]
          %v1250 = vrcp.pop %v1249
          %v1251 = vld [vmem:[%s1099] sm:$0xff]
          %1253 = vset.pattern.permute.xlu0 0
          %1254 = vperm.xlu0 %1253, %v1250
          %v1255 = vpop.permute.xlu0 %1254
          %v1257 = vmul.f32 %v1251, %v1255
          %1259 = vrot.lane.b32.xlu0 %v1257, 16
          %v1260 = vpop.permute.xlu0 %1259
          %vm1262 = vcmask 195712
          %1263 = vst.msk [vmem:[#allocation6] sm:$0xff] %vm1262, %v1260
          %v1264 = vld [vmem:[%s1180] sm:$0xff]
          %v1265 = vrcp.pop %v1264
          %v1266 = vld [vmem:[%s1188] sm:$0xff]
          %1268 = vset.pattern.permute.xlu0 0
          %1269 = vperm.xlu0 %1268, %v1265
          %v1270 = vpop.permute.xlu0 %1269
          %v1272 = vmul.f32 %v1266, %v1270
          %1274 = vrot.lane.b32.xlu0 %v1272, 24
          %v1275 = vpop.permute.xlu0 %1274
          %vm1277 = vcmask 261312
          %1278 = vst.msk [vmem:[#allocation6] sm:$0xff] %vm1277, %v1275
          %v1279 = vld [vmem:[#allocation6] sm:$0xff]
          %v1280 = vpack.c.bf16 %v1279, %v1279
          %v1281 = vld [vmem:[#allocation19] sm:$0xf]
          %v1282 = vld [vmem:[#allocation19 + $0x4] sm:$0xf]
          %v1283 = vld [vmem:[#allocation19 + $0x8] sm:$0xf]
          %v1284 = vld [vmem:[#allocation19 + $0xc] sm:$0xf]
          %v1285 = vld [vmem:[%s11] sm:$0x1]
          %v1287 = vperm.slane %v1285, 0
          %v1293 = vunpack.c.l.b16 %v1281
          %v1294 = vunpack.c.l.b16 %v1282
          %v1295 = vunpack.c.l.b16 %v1283
          %v1296 = vunpack.c.l.b16 %v1284
          %v1297 = vpack.c.b16 %v1294, %v1293
          %v1298 = vpack.c.b16 %v1296, %v1295
          %v1302 = vsel %vm811, %v1280, 0
          %1304 = vmatpush.bf16.msra.mxu0 0
          %1305 = vmatpush.bf16.msra.mxu0 0
          %1306 = vmatpush.bf16.msra.mxu0 0
          %1307 = vmatpush.bf16.msra.mxu0 0
          %1308 = vmatpush.bf16.msra.mxu0 0
          %1309 = vmatpush.bf16.msra.mxu0 0
          %1310 = vmatpush.bf16.msra.mxu0 %v1298
          %1311 = vmatpush.bf16.msra.mxu0 %v1297
          %1312 = vmatmul.bf16.gmra.mxu0 %v1302
          %v1313 = vpop.f32.mrf.mxu0
          %v1314 = vadd.f32 %v1287, %v1313
          %v1315 = vpop.f32.mrf.mxu0
          %1316 = vdwg.mxu0
          %v1317 = vld [vmem:[%s636] sm:$0xff]
          %v1318 = vadd.f32 %v1314, %v1317
          %v1319 = vsel %vm811, %v1318, 0.0
          %1320 = vadd.xlane.f32.xlu0 %v1319
          %v1321 = vpop.xlane.xlu0 %1320
          %v1322 = vrcp.pop 32.0
          %v1323 = vmul.f32 32.0, %v1322
          %v1324 = vsub.f32 1.0, %v1323
          %v1325 = vmul.f32 %v1322, %v1324
          %v1326 = vadd.f32 %v1322, %v1325
          %vm1327 = vweird.f32 %v1322
          %v1328 = vsel %vm1327, %v1322, %v1326
          %v1329 = vmul.f32 %v1321, %v1328
          %v1330 = vsub.f32 %v1318, %v1329
          %v1331 = vmul.f32 %v1330, %v1330
          %v1332 = vsel %vm811, %v1331, 0.0
          %1333 = vadd.xlane.f32.xlu0 %v1332
          %v1334 = vpop.xlane.xlu0 %1333
          %v1335 = vmul.f32 %v1334, %v1328
          %v1336 = vadd.f32 %v1335, 1e-05
          %v1337 = vrsqrt.pop %v1336
          %v1338 = vmul.f32 %v1337, %v1336
          %v1339 = vmul.f32 %v1338, %v1337
          %v1340 = vmul.f32 0.5, %v1339
          %v1341 = vsub.f32 1.5, %v1340
          %v1342 = vmul.f32 %v1337, %v1341
          %vm1343 = vweird.f32 %v1336
          %vm1344 = vweird.f32 %v1337
          %vm1345 = vmor %vm1343, %vm1344
          %v1346 = vsel %vm1345, %v1337, %v1342
          %v1347 = vmul.f32 %v1330, %v1346
          %v1348 = vld [vmem:[%s12] sm:$0x1]
          %v1350 = vperm.slane %v1348, 0
          %v1352 = vmul.f32 %v1347, %v1350
          %v1353 = vld [vmem:[%s13] sm:$0x1]
          %v1355 = vperm.slane %v1353, 0
          %v1357 = vadd.f32 %v1352, %v1355
          %1358 = vst.msk [vmem:[%s722] sm:$0xff] %vm811, %v1357
        $region120: #{tpu_custom_call.1} parent=79 // pred_fallthru
          _
        %s1359 = sand.u32 %s404, 1
        %s1360 = scalar_lea.sflag [#allocation9], %s1359
        %s1361 = sand.u32 %s404, 1
        %s1362 = smul.addr %s1361, 8
        %s1363 = scalar_lea.vmem [#allocation21], %s1362
        // Predicated region
        $region121: #{tpu_custom_call.1} parent=79 // pred_check
          %p1364 = pneg %p414
        $region122: #{tpu_custom_call.1} parent=79 // pred_check_branch
          %1366 = sbr.rel (%p1364) target = $region124
        $region123: #{tpu_custom_call.1} parent=79 // pred_region
          %1368 = vsyncadd %s1360, 0
          %s1369 = smul.addr %s44, 8
          %s1370 = scalar_lea.hbm %s15, %s1369
          %s1372 = sshll.u32 %s1363, 4
          %s1373 = int_to_ptr.vmem [resolvable:$true] %s1372
          %s1374 = sshll.u32 %s1370, 4
          %s1375 = int_to_ptr.hbm [resolvable:$true] %s1374
          %1377 = dma.vmem_to_hbm [thread:$0]  %s1373, 128, %s1375, %s1360
        $region124: #{tpu_custom_call.1} parent=79 // pred_fallthru
          _
      $region80: #{tpu_custom_call.1} parent=5 // pred_fallthru
        _
      %p1378 = scmp.le.s32.totalorder 2, %s35
      // Predicated region
      $region125: #{tpu_custom_call.1} parent=5 // pred_check
        %p1379 = pneg %p1378
      $region126: #{tpu_custom_call.1} parent=5 // pred_check_branch
        %1381 = sbr.rel (%p1379) target = $region128
      $region127: #{tpu_custom_call.1} parent=5 // pred_region
        %s1382 = ssub.s32 %s35, 2
        // Predicated region
        $region129: #{tpu_custom_call.1} parent=127 // pred_check
          %p1383 = pneg %p420
        $region130: #{tpu_custom_call.1} parent=127 // pred_check_branch
          %1385 = sbr.rel (%p1383) target = $region132
        $region131: #{tpu_custom_call.1} parent=127 // pred_region
          %s1386 = sand.u32 %s405, 1
          %s1387 = scalar_lea.sflag [#allocation9], %s1386
          %s1388 = sand.u32 %s405, 1
          %s1389 = smul.addr %s1388, 8
          %s1390 = scalar_lea.vmem [#allocation21], %s1389
          %1392 = dma.done %s1387, 128
        $region132: #{tpu_custom_call.1} parent=127 // pred_fallthru
          _
      $region128: #{tpu_custom_call.1} parent=5 // pred_fallthru
        _
    $region6: #{tpu_custom_call.1} parent=1 // loop_footer
      %s39 = sadd.s32 1, %s35
    $region7: #{tpu_custom_call.1} parent=1 // loop_footer_branch
      %34 = sbr.rel target = $region3
    $region8: #{tpu_custom_call.1} parent=1 // loop_exit
      _
    %1393 = vsyncpa [#allocation8], 1
    %s1394 = scalar_lea.sflag [#allocation8], 1
    %1395 = vsyncpa %s1394, 1
    %1396 = vsyncpa [#allocation11], 1
    %s1397 = scalar_lea.sflag [#allocation11], 1
    %1398 = vsyncpa %s1397, 1
    %1399 = vsyncpa [#allocation14], 1
    %s1400 = scalar_lea.sflag [#allocation14], 1
    %1401 = vsyncpa %s1400, 1
    %1402 = vsyncpa [#allocation17], 1
    %1403 = vsyncpa [#allocation20], 1
    %1404 = vsyncpa [#allocation9], 1
    %s1405 = scalar_lea.sflag [#allocation9], 1
    %1406 = vsyncpa %s1405, 1

</llo_original>
